<compile_context>
chip_gen: v7x
topology: tpu7x:2x2x1
jax: 0.10.0
libtpu: 0.0.40
codegen_flags: <defaults>
</compile_context>

<pallas_src>
import functools
import math

import jax
import jax.numpy as jnp
import numpy as np
from jax import lax
from jax.experimental import pallas as pl
from jax.experimental.pallas import tpu as pltpu


def _encoder_body(xq, xkv_bf,
                  wq_ref, wkv_ref, wfc_ref,
                  ln1_g_ref, ln1_b_ref,
                  w1_ref, b1_ref, w2_ref, b2_ref,
                  ln2_g_ref, ln2_b_ref,
                  out_ref, attn_ref,
                  *, n_head, d_k, d_v, eps):
    f32 = jnp.float32
    bf16 = jnp.bfloat16
    tq, d_model = xq.shape

    xq_bf = xq.astype(bf16)

    def head_body(h, proj_acc):
        # Per-head projections against head-stacked (in, out) bf16 weights.
        # K and V are fused into a single matmul (one weight pass over x_kv).
        q_h = jnp.dot(xq_bf, wq_ref[h], preferred_element_type=f32)      # (tq, dk)
        kv_h = jnp.dot(xkv_bf, wkv_ref[h], preferred_element_type=f32)   # (Lk, dk+dv)
        k_h = kv_h[:, :d_k].astype(bf16)                                 # (Lk, dk)
        v_h = kv_h[:, d_k:].astype(bf16)                                 # (Lk, dv)

        # Q @ K^T: contract the last dims, no materialized transpose.
        dn = (((1,), (1,)), ((), ()))
        s = lax.dot_general(q_h.astype(bf16), k_h, dn,
                            preferred_element_type=f32)                  # (tq, Lk)

        m = jnp.max(s, axis=-1, keepdims=True)
        e = jnp.exp(s - m)
        denom = jnp.sum(e, axis=-1, keepdims=True)
        # Exact reciprocal: attn is a module output, rows must sum to ~1.
        attn = e * pl.reciprocal(denom)                                  # (tq, Lk)
        attn_ref[0, h, :, :] = attn.astype(attn_ref.dtype)

        ctx = jnp.dot(attn.astype(bf16), v_h, preferred_element_type=f32)  # (tq, dv)
        # Per-head slice of the output projection, accumulated over heads
        # (replaces the concatenated-context scratch slab).
        return proj_acc + jnp.dot(ctx.astype(bf16), wfc_ref[h],
                                  preferred_element_type=f32)            # (tq, dm)

    # fori_loop (not an unrolled python loop) bounds per-head live ranges.
    proj = lax.fori_loop(0, n_head, head_body, jnp.zeros((tq, d_model), f32))

    # Residual + LayerNorm 1 (f32).
    y = proj + xq
    mu = jnp.mean(y, axis=-1, keepdims=True)
    var = jnp.mean(jnp.square(y - mu), axis=-1, keepdims=True)
    y = (y - mu) * lax.rsqrt(var + eps)
    y = y * ln1_g_ref[...] + ln1_b_ref[...]

    # Position-wise feed-forward (bf16 matmuls, f32 bias / relu / accumulate).
    h1 = jnp.dot(y.astype(bf16), w1_ref[...], preferred_element_type=f32)
    h1 = jnp.maximum(h1 + b1_ref[...], 0.0)                              # (tq, d_inner)
    h2 = jnp.dot(h1.astype(bf16), w2_ref[...], preferred_element_type=f32)
    h2 = h2 + b2_ref[...]                                                # (tq, d_model)

    # Residual + LayerNorm 2 (f32).
    z = h2 + y
    mu2 = jnp.mean(z, axis=-1, keepdims=True)
    var2 = jnp.mean(jnp.square(z - mu2), axis=-1, keepdims=True)
    z = (z - mu2) * lax.rsqrt(var2 + eps)
    out_ref[0] = z * ln2_g_ref[...] + ln2_b_ref[...]


def _kernel_shared_kv(x_q_ref, *refs, n_head, d_k, d_v, eps):
    # tq == L: the query tile IS the whole sequence -> reuse it for the K/V
    # projections; no second full-sequence DMA / double buffer.
    xq = x_q_ref[0]
    _encoder_body(xq, xq.astype(jnp.bfloat16), *refs,
                  n_head=n_head, d_k=d_k, d_v=d_v, eps=eps)


def _kernel_split_kv(x_q_ref, x_kv_ref, *refs, n_head, d_k, d_v, eps):
    # x_kv arrives already in bf16 (cast once in the wrapper) -> half the DMA.
    _encoder_body(x_q_ref[0], x_kv_ref[0], *refs,
                  n_head=n_head, d_k=d_k, d_v=d_v, eps=eps)


def _vmem_limit_bytes():
    """Per-generation VMEM cap: ~48 MiB on v7x (64 MiB physical), ~96-100 MiB
    on v5e/v6e (128 MiB physical)."""
    cap = 128 * 1024 * 1024
    try:
        cap = int(getattr(pltpu.get_tpu_info(), "vmem_capacity_bytes", cap))
    except Exception:
        pass
    return int(min(100 * 1024 * 1024, cap * 3 // 4))


def encoder_layer(x, params, *, n_head, d_k, d_v, eps=1e-6, q_tile=256,
                  attn_dtype=jnp.float32):
    """x: (B, L, d_model) f32.  Returns (enc_output, enc_slf_attn) like the module.

    attn_dtype=jnp.bfloat16 halves the O(B*H*L^2) attention-probability
    writeback (the dominant HBM traffic at realistic L)."""
    (wq, wk, wv, wfc, ln1_g, ln1_b, w1, b1, w2, b2, ln2_g, ln2_b) = params
    B, L, d_model = x.shape
    d_inner = w1.shape[0]
    temperature = d_k ** 0.5
    vmem_limit = _vmem_limit_bytes()

    # ------------------------- q-tile selection ---------------------------
    tq = min(q_tile, L)
    assert L % tq == 0, "seq length must be divisible by the q tile"

    # Shrink tq while the per-step pipelined buffers (the attn-out block
    # dominates at realistic L) would not fit comfortably in the VMEM budget.
    # This keeps the same kernel inside v7x's 64 MiB as well as v5e/v6e's 128.
    attn_itemsize = np.dtype(attn_dtype).itemsize

    def _step_bytes(t):
        return (2 * n_head * t * L * attn_itemsize   # attn out, double-buffered
                + 2 * t * d_model * 4                # x_q in, double-buffered
                + 2 * t * d_model * 4                # out,    double-buffered
                + 2 * L * d_model * 2)               # bf16 K/V block

    while (tq > 8 and tq % 2 == 0 and (tq // 2) % 8 == 0
           and _step_bytes(tq) > vmem_limit // 2):
        tq //= 2

    n_qt = L // tq
    shared_kv = (n_qt == 1)

    # --------------------- trace-time weight plumbing ----------------------
    # Head-stacked, (in, out)-layout, bf16 weights; 1/temperature folded into
    # Wq; K and V weights concatenated so each head does one fused KV matmul.
    wq_h = (wq.reshape(n_head, d_k, d_model).transpose(0, 2, 1)
            / temperature).astype(jnp.bfloat16)                  # (H, dm, dk)
    wk_h = wk.reshape(n_head, d_k, d_model).transpose(0, 2, 1)   # (H, dm, dk)
    wv_h = wv.reshape(n_head, d_v, d_model).transpose(0, 2, 1)   # (H, dm, dv)
    wkv_h = jnp.concatenate([wk_h, wv_h], axis=-1).astype(jnp.bfloat16)
    wfc_h = wfc.T.reshape(n_head, d_v, d_model).astype(jnp.bfloat16)

    w1_t = w1.T.astype(jnp.bfloat16)                             # (dm, d_inner)
    w2_t = w2.T.astype(jnp.bfloat16)                             # (d_inner, dm)
    ln1_g2 = ln1_g.reshape(1, d_model).astype(jnp.float32)
    ln1_b2 = ln1_b.reshape(1, d_model).astype(jnp.float32)
    ln2_g2 = ln2_g.reshape(1, d_model).astype(jnp.float32)
    ln2_b2 = ln2_b.reshape(1, d_model).astype(jnp.float32)
    b1_2 = b1.reshape(1, d_inner).astype(jnp.float32)
    b2_2 = b2.reshape(1, d_model).astype(jnp.float32)

    weight_args = (wq_h, wkv_h, wfc_h, ln1_g2, ln1_b2,
                   w1_t, b1_2, w2_t, b2_2, ln2_g2, ln2_b2)
    # Grid-invariant operands: whole array resident in VMEM for the kernel
    # lifetime (single copy, no per-step double-buffered DMA).
    weight_specs = [pl.BlockSpec(memory_space=pltpu.MemorySpace.VMEM)
                    for _ in weight_args]

    in_args = [x]
    in_specs = [pl.BlockSpec((1, tq, d_model), lambda b, qi: (b, qi, 0))]
    if shared_kv:
        kernel_fn = _kernel_shared_kv
    else:
        kernel_fn = _kernel_split_kv
        # K/V activations travel as bf16 (cast once here); x_q stays f32 only
        # because it is also the residual.
        in_args.append(x.astype(jnp.bfloat16))
        in_specs.append(pl.BlockSpec((1, L, d_model), lambda b, qi: (b, 0, 0)))
    in_args.extend(weight_args)
    in_specs.extend(weight_specs)

    kernel = functools.partial(kernel_fn, n_head=n_head, d_k=d_k, d_v=d_v,
                               eps=eps)

    out, attn = pl.pallas_call(
        kernel,
        out_shape=(
            jax.ShapeDtypeStruct((B, L, d_model), jnp.float32),
            jax.ShapeDtypeStruct((B, n_head, L, L), attn_dtype),
        ),
        grid_spec=pltpu.PrefetchScalarGridSpec(
            num_scalar_prefetch=0,
            grid=(B, n_qt),
            in_specs=in_specs,
            out_specs=[
                pl.BlockSpec((1, tq, d_model), lambda b, qi: (b, qi, 0)),
                pl.BlockSpec((1, n_head, tq, L), lambda b, qi: (b, 0, qi, 0)),
            ],
        ),
        compiler_params=pltpu.CompilerParams(
            dimension_semantics=("parallel", "parallel"),
            vmem_limit_bytes=vmem_limit),
    )(*in_args)
    return out, attn


def _layernorm_ref(x, g, b, eps):
    mu = x.mean(-1, keepdims=True)
    var = ((x - mu) ** 2).mean(-1, keepdims=True)
    return (x - mu) / jnp.sqrt(var + eps) * g + b


def _reference(x, params, *, n_head, d_k, d_v, eps=1e-6):
    """Plain-JAX (f32) reference mirroring the PyTorch EncoderLayer forward (eval)."""
    (wq, wk, wv, wfc, ln1_g, ln1_b, w1, b1, w2, b2, ln2_g, ln2_b) = params
    B, L, d_model = x.shape
    residual = x
    q = (x @ wq.T).reshape(B, L, n_head, d_k).transpose(0, 2, 1, 3)
    k = (x @ wk.T).reshape(B, L, n_head, d_k).transpose(0, 2, 1, 3)
    v = (x @ wv.T).reshape(B, L, n_head, d_v).transpose(0, 2, 1, 3)
    scores = jnp.einsum("bhqd,bhkd->bhqk", q / (d_k ** 0.5), k)
    attn = jax.nn.softmax(scores, axis=-1)
    ctx = jnp.einsum("bhqk,bhkd->bhqd", attn, v)
    ctx = ctx.transpose(0, 2, 1, 3).reshape(B, L, n_head * d_v)
    y = ctx @ wfc.T + residual
    y = _layernorm_ref(y, ln1_g, ln1_b, eps)
    h = jax.nn.relu(y @ w1.T + b1)
    z = h @ w2.T + b2 + y
    z = _layernorm_ref(z, ln2_g, ln2_b, eps)
    return z, attn


if __name__ == "__main__":
    # Small shapes consistent with the module: B=2, seq=32, d_model=32,
    # 4 heads of 8, FFN hidden=64.
    B, L, d_model = 2, 32, 32
    n_head, d_k, d_v = 4, 8, 8
    d_inner = 64

    key = jax.random.PRNGKey(0)
    ks = jax.random.split(key, 12)

    x = jax.random.normal(ks[0], (B, L, d_model), dtype=jnp.float32)

    # nn.Linear layout: (out_features, in_features).
    s = 1.0 / math.sqrt(d_model)
    wq = jax.random.uniform(ks[1], (n_head * d_k, d_model), jnp.float32, -s, s)
    wk = jax.random.uniform(ks[2], (n_head * d_k, d_model), jnp.float32, -s, s)
    wv = jax.random.uniform(ks[3], (n_head * d_v, d_model), jnp.float32, -s, s)
    wfc = jax.random.uniform(ks[4], (d_model, n_head * d_v), jnp.float32, -s, s)

    s1 = 1.0 / math.sqrt(d_model)
    w1 = jax.random.uniform(ks[5], (d_inner, d_model), jnp.float32, -s1, s1)
    b1 = jax.random.uniform(ks[6], (d_inner,), jnp.float32, -s1, s1)
    s2 = 1.0 / math.sqrt(d_inner)
    w2 = jax.random.uniform(ks[7], (d_model, d_inner), jnp.float32, -s2, s2)
    b2 = jax.random.uniform(ks[8], (d_model,), jnp.float32, -s2, s2)

    ln1_g = 1.0 + 0.1 * jax.random.normal(ks[9], (d_model,), jnp.float32)
    ln1_b = 0.1 * jax.random.normal(ks[10], (d_model,), jnp.float32)
    ln2_g = 1.0 + 0.1 * jax.random.normal(ks[11], (d_model,), jnp.float32)
    ln2_b = jnp.zeros((d_model,), jnp.float32)

    params = (wq, wk, wv, wfc, ln1_g, ln1_b, w1, b1, w2, b2, ln2_g, ln2_b)

    out_exp, attn_exp = _reference(x, params, n_head=n_head, d_k=d_k, d_v=d_v)

    # Path 1: tq == L -> shared K/V window (no second full-seq DMA), f32 attn.
    out1, attn1 = encoder_layer(x, params, n_head=n_head, d_k=d_k, d_v=d_v)
    out1, attn1 = jax.block_until_ready((out1, attn1))

    # Path 2: tq < L -> separate bf16 K/V stream + bf16 attention output.
    out2, attn2 = encoder_layer(x, params, n_head=n_head, d_k=d_k, d_v=d_v,
                                q_tile=16, attn_dtype=jnp.bfloat16)
    out2, attn2 = jax.block_until_ready((out2, attn2))

    # Tolerances loosened for bf16 MXU matmuls (f32 reference).
    np.testing.assert_allclose(np.asarray(out1), np.asarray(out_exp),
                               rtol=5e-2, atol=5e-2)
    np.testing.assert_allclose(np.asarray(attn1), np.asarray(attn_exp),
                               rtol=5e-2, atol=5e-2)
    np.testing.assert_allclose(np.asarray(out2), np.asarray(out_exp),
                               rtol=5e-2, atol=5e-2)
    np.testing.assert_allclose(np.asarray(attn2.astype(jnp.float32)),
                               np.asarray(attn_exp), rtol=5e-2, atol=5e-2)

    print("KERNEL_OK")
</pallas_src>

<mosaic_0001>
module attributes {stable_mosaic.version = 11 : i64} {
  func.func @_kernel_shared_kv(%arg0: i32, %arg1: i32, %arg2: memref<1x32x32xf32, #tpu.memory_space<vmem>>, %arg3: memref<4x32x8xbf16, #tpu.memory_space<vmem>>, %arg4: memref<4x32x16xbf16, #tpu.memory_space<vmem>>, %arg5: memref<4x8x32xbf16, #tpu.memory_space<vmem>>, %arg6: memref<1x32xf32, #tpu.memory_space<vmem>>, %arg7: memref<1x32xf32, #tpu.memory_space<vmem>>, %arg8: memref<32x64xbf16, #tpu.memory_space<vmem>>, %arg9: memref<1x64xf32, #tpu.memory_space<vmem>>, %arg10: memref<64x32xbf16, #tpu.memory_space<vmem>>, %arg11: memref<1x32xf32, #tpu.memory_space<vmem>>, %arg12: memref<1x32xf32, #tpu.memory_space<vmem>>, %arg13: memref<1x32xf32, #tpu.memory_space<vmem>>, %arg14: memref<1x32x32xf32, #tpu.memory_space<vmem>>, %arg15: memref<1x4x32x32xf32, #tpu.memory_space<vmem>>) attributes {dimension_semantics = [#tpu.dimension_semantics<parallel>, #tpu.dimension_semantics<parallel>], iteration_bounds = array<i64: 2, 1>, scalar_prefetch = 0 : i64, scratch_operands = 0 : i64, tpu.core_type = #tpu.core_type<tc>, window_params = [{transform_indices = @transform_0, window_bounds = array<i64: 1, 32, 32>}, {pipeline_mode = #tpu.pipeline_mode<synchronous>, transform_indices = @transform_1, window_bounds = array<i64: 4, 32, 8>}, {pipeline_mode = #tpu.pipeline_mode<synchronous>, transform_indices = @transform_2, window_bounds = array<i64: 4, 32, 16>}, {pipeline_mode = #tpu.pipeline_mode<synchronous>, transform_indices = @transform_3, window_bounds = array<i64: 4, 8, 32>}, {pipeline_mode = #tpu.pipeline_mode<synchronous>, transform_indices = @transform_4, window_bounds = array<i64: 1, 32>}, {pipeline_mode = #tpu.pipeline_mode<synchronous>, transform_indices = @transform_5, window_bounds = array<i64: 1, 32>}, {pipeline_mode = #tpu.pipeline_mode<synchronous>, transform_indices = @transform_6, window_bounds = array<i64: 32, 64>}, {pipeline_mode = #tpu.pipeline_mode<synchronous>, transform_indices = @transform_7, window_bounds = array<i64: 1, 64>}, {pipeline_mode = #tpu.pipeline_mode<synchronous>, transform_indices = @transform_8, window_bounds = array<i64: 64, 32>}, {pipeline_mode = #tpu.pipeline_mode<synchronous>, transform_indices = @transform_9, window_bounds = array<i64: 1, 32>}, {pipeline_mode = #tpu.pipeline_mode<synchronous>, transform_indices = @transform_10, window_bounds = array<i64: 1, 32>}, {pipeline_mode = #tpu.pipeline_mode<synchronous>, transform_indices = @transform_11, window_bounds = array<i64: 1, 32>}, {transform_indices = @transform_12, window_bounds = array<i64: 1, 32, 32>}, {transform_indices = @transform_13, window_bounds = array<i64: 1, 4, 32, 32>}]} {
    %c0 = arith.constant 0 : index
    %c0_0 = arith.constant 0 : index
    %c0_1 = arith.constant 0 : index
    %0 = vector.load %arg2[%c0, %c0_0, %c0_1] : memref<1x32x32xf32, #tpu.memory_space<vmem>>, vector<1x32x32xf32>
    %1 = vector.shape_cast %0 : vector<1x32x32xf32> to vector<32x32xf32>
    %2 = arith.truncf %1 : vector<32x32xf32> to vector<32x32xbf16>
    %3 = arith.truncf %1 : vector<32x32xf32> to vector<32x32xbf16>
    %cst = arith.constant 0.000000e+00 : f32
    %4 = vector.broadcast %cst : f32 to vector<32x32xf32>
    %c0_i32 = arith.constant 0 : i32
    %c4_i32 = arith.constant 4 : i32
    %5 = arith.addi %c0_i32, %c4_i32 : i32
    %c1_i32 = arith.constant 1 : i32
    %6 = scf.for %arg16 = %c0_i32 to %5 step %c1_i32 iter_args(%arg17 = %4) -> (vector<32x32xf32>)  : i32 {
      %74 = arith.index_cast %arg16 : i32 to index
      %c0_35 = arith.constant 0 : index
      %c0_36 = arith.constant 0 : index
      %75 = vector.load %arg3[%74, %c0_35, %c0_36] : memref<4x32x8xbf16, #tpu.memory_space<vmem>>, vector<1x32x8xbf16>
      %76 = vector.shape_cast %75 : vector<1x32x8xbf16> to vector<32x8xbf16>
      %cst_37 = arith.constant dense<0.000000e+00> : vector<32x8xf32>
      %77 = tpu.matmul %3, %76, %cst_37 {dimension_numbers = #tpu.dot_dimension_numbers<[1], [0], [0], [1], [0, 0, 1, 1], [], []>} : vector<32x32xbf16>, vector<32x8xbf16>, vector<32x8xf32> -> vector<32x8xf32>
      %78 = arith.index_cast %arg16 : i32 to index
      %c0_38 = arith.constant 0 : index
      %c0_39 = arith.constant 0 : index
      %79 = vector.load %arg4[%78, %c0_38, %c0_39] : memref<4x32x16xbf16, #tpu.memory_space<vmem>>, vector<1x32x16xbf16>
      %80 = vector.shape_cast %79 : vector<1x32x16xbf16> to vector<32x16xbf16>
      %cst_40 = arith.constant dense<0.000000e+00> : vector<32x16xf32>
      %81 = tpu.matmul %2, %80, %cst_40 {dimension_numbers = #tpu.dot_dimension_numbers<[1], [0], [0], [1], [0, 0, 1, 1], [], []>} : vector<32x32xbf16>, vector<32x16xbf16>, vector<32x16xf32> -> vector<32x16xf32>
      %82 = vector.extract_strided_slice %81 {offsets = [0, 0], sizes = [32, 8], strides = [1, 1]} : vector<32x16xf32> to vector<32x8xf32>
      %83 = arith.truncf %82 : vector<32x8xf32> to vector<32x8xbf16>
      %84 = vector.extract_strided_slice %81 {offsets = [0, 8], sizes = [32, 8], strides = [1, 1]} : vector<32x16xf32> to vector<32x8xf32>
      %85 = arith.truncf %84 : vector<32x8xf32> to vector<32x8xbf16>
      %86 = arith.truncf %77 : vector<32x8xf32> to vector<32x8xbf16>
      %cst_41 = arith.constant dense<0.000000e+00> : vector<32x32xf32>
      %87 = tpu.matmul %86, %83, %cst_41 {dimension_numbers = #tpu.dot_dimension_numbers<[1], [1], [0], [0], [0, 0, 1, 0], [], []>} : vector<32x8xbf16>, vector<32x8xbf16>, vector<32x32xf32> -> vector<32x32xf32>
      %cst_42 = arith.constant dense<0xFF800000> : vector<32xf32>
      %88 = vector.multi_reduction <maximumf>, %87, %cst_42 [1] : vector<32x32xf32> to vector<32xf32>
      %89 = vector.shape_cast %88 : vector<32xf32> to vector<32x1xf32>
      %90 = vector.broadcast %89 : vector<32x1xf32> to vector<32x32xf32>
      %91 = arith.subf %87, %90 : vector<32x32xf32>
      %92 = math.exp %91 : vector<32x32xf32>
      %cst_43 = arith.constant dense<0.000000e+00> : vector<32xf32>
      %93 = vector.multi_reduction <add>, %92, %cst_43 [1] : vector<32x32xf32> to vector<32xf32>
      %94 = vector.shape_cast %93 : vector<32xf32> to vector<32x1xf32>
      %95 = tpu.reciprocal %94 : vector<32x1xf32> -> vector<32x1xf32>
      %96 = vector.broadcast %95 : vector<32x1xf32> to vector<32x32xf32>
      %97 = arith.mulf %92, %96 : vector<32x32xf32>
      %c0_44 = arith.constant 0 : index
      %98 = arith.index_cast %arg16 : i32 to index
      %c0_45 = arith.constant 0 : index
      %c0_46 = arith.constant 0 : index
      %99 = vector.load %arg15[%c0_44, %98, %c0_45, %c0_46] : memref<1x4x32x32xf32, #tpu.memory_space<vmem>>, vector<1x1x32x32xf32>
      %100 = vector.shape_cast %99 : vector<1x1x32x32xf32> to vector<32x32xf32>
      %101 = vector.shape_cast %97 : vector<32x32xf32> to vector<1x1x32x32xf32>
      tpu.vector_store %arg15[%c0_44, %98, %c0_45, %c0_46], %101 {strides = array<i32>} : memref<1x4x32x32xf32, #tpu.memory_space<vmem>>, vector<1x1x32x32xf32>,
      %102 = arith.truncf %97 : vector<32x32xf32> to vector<32x32xbf16>
      %cst_47 = arith.constant dense<0.000000e+00> : vector<32x8xf32>
      %103 = tpu.matmul %102, %85, %cst_47 {dimension_numbers = #tpu.dot_dimension_numbers<[1], [0], [0], [1], [0, 0, 1, 1], [], []>} : vector<32x32xbf16>, vector<32x8xbf16>, vector<32x8xf32> -> vector<32x8xf32>
      %104 = arith.truncf %103 : vector<32x8xf32> to vector<32x8xbf16>
      %105 = arith.index_cast %arg16 : i32 to index
      %c0_48 = arith.constant 0 : index
      %c0_49 = arith.constant 0 : index
      %106 = vector.load %arg5[%105, %c0_48, %c0_49] : memref<4x8x32xbf16, #tpu.memory_space<vmem>>, vector<1x8x32xbf16>
      %107 = vector.shape_cast %106 : vector<1x8x32xbf16> to vector<8x32xbf16>
      %cst_50 = arith.constant dense<0.000000e+00> : vector<32x32xf32>
      %108 = tpu.matmul %104, %107, %cst_50 {dimension_numbers = #tpu.dot_dimension_numbers<[1], [0], [0], [1], [0, 0, 1, 1], [], []>} : vector<32x8xbf16>, vector<8x32xbf16>, vector<32x32xf32> -> vector<32x32xf32>
      %109 = arith.addf %arg17, %108 : vector<32x32xf32>
      scf.yield %109 : vector<32x32xf32>
    }
    %c4_i32_2 = arith.constant 4 : i32
    %7 = arith.addf %6, %1 : vector<32x32xf32>
    %cst_3 = arith.constant dense<0.000000e+00> : vector<32xf32>
    %8 = vector.multi_reduction <add>, %7, %cst_3 [1] : vector<32x32xf32> to vector<32xf32>
    %9 = vector.shape_cast %8 : vector<32xf32> to vector<32x1xf32>
    %cst_4 = arith.constant 3.200000e+01 : f32
    %10 = vector.broadcast %cst_4 : f32 to vector<32x1xf32>
    %11 = arith.divf %9, %10 : vector<32x1xf32>
    %12 = vector.broadcast %11 : vector<32x1xf32> to vector<32x32xf32>
    %13 = arith.subf %7, %12 : vector<32x32xf32>
    %14 = arith.mulf %13, %13 : vector<32x32xf32>
    %cst_5 = arith.constant dense<0.000000e+00> : vector<32xf32>
    %15 = vector.multi_reduction <add>, %14, %cst_5 [1] : vector<32x32xf32> to vector<32xf32>
    %16 = vector.shape_cast %15 : vector<32xf32> to vector<32x1xf32>
    %cst_6 = arith.constant 3.200000e+01 : f32
    %17 = vector.broadcast %cst_6 : f32 to vector<32x1xf32>
    %18 = arith.divf %16, %17 : vector<32x1xf32>
    %19 = vector.broadcast %11 : vector<32x1xf32> to vector<32x32xf32>
    %20 = arith.subf %7, %19 : vector<32x32xf32>
    %cst_7 = arith.constant 9.99999997E-7 : f32
    %21 = vector.broadcast %cst_7 : f32 to vector<32x1xf32>
    %22 = arith.addf %18, %21 : vector<32x1xf32>
    %23 = math.rsqrt %22 : vector<32x1xf32>
    %24 = vector.broadcast %23 : vector<32x1xf32> to vector<32x32xf32>
    %25 = arith.mulf %20, %24 : vector<32x32xf32>
    %c0_8 = arith.constant 0 : index
    %c0_9 = arith.constant 0 : index
    %26 = vector.load %arg6[%c0_8, %c0_9] : memref<1x32xf32, #tpu.memory_space<vmem>>, vector<1x32xf32>
    %27 = vector.broadcast %26 : vector<1x32xf32> to vector<32x32xf32>
    %28 = arith.mulf %25, %27 : vector<32x32xf32>
    %c0_10 = arith.constant 0 : index
    %c0_11 = arith.constant 0 : index
    %29 = vector.load %arg7[%c0_10, %c0_11] : memref<1x32xf32, #tpu.memory_space<vmem>>, vector<1x32xf32>
    %30 = vector.broadcast %29 : vector<1x32xf32> to vector<32x32xf32>
    %31 = arith.addf %28, %30 : vector<32x32xf32>
    %32 = arith.truncf %31 : vector<32x32xf32> to vector<32x32xbf16>
    %c0_12 = arith.constant 0 : index
    %c0_13 = arith.constant 0 : index
    %33 = vector.load %arg8[%c0_12, %c0_13] : memref<32x64xbf16, #tpu.memory_space<vmem>>, vector<32x64xbf16>
    %cst_14 = arith.constant dense<0.000000e+00> : vector<32x64xf32>
    %34 = tpu.matmul %32, %33, %cst_14 {dimension_numbers = #tpu.dot_dimension_numbers<[1], [0], [0], [1], [0, 0, 1, 1], [], []>} : vector<32x32xbf16>, vector<32x64xbf16>, vector<32x64xf32> -> vector<32x64xf32>
    %c0_15 = arith.constant 0 : index
    %c0_16 = arith.constant 0 : index
    %35 = vector.load %arg9[%c0_15, %c0_16] : memref<1x64xf32, #tpu.memory_space<vmem>>, vector<1x64xf32>
    %36 = vector.broadcast %35 : vector<1x64xf32> to vector<32x64xf32>
    %37 = arith.addf %34, %36 : vector<32x64xf32>
    %cst_17 = arith.constant 0.000000e+00 : f32
    %38 = vector.broadcast %cst_17 : f32 to vector<32x64xf32>
    %39 = arith.maximumf %37, %38 : vector<32x64xf32>
    %40 = arith.truncf %39 : vector<32x64xf32> to vector<32x64xbf16>
    %c0_18 = arith.constant 0 : index
    %c0_19 = arith.constant 0 : index
    %41 = vector.load %arg10[%c0_18, %c0_19] : memref<64x32xbf16, #tpu.memory_space<vmem>>, vector<64x32xbf16>
    %cst_20 = arith.constant dense<0.000000e+00> : vector<32x32xf32>
    %42 = tpu.matmul %40, %41, %cst_20 {dimension_numbers = #tpu.dot_dimension_numbers<[1], [0], [0], [1], [0, 0, 1, 1], [], []>} : vector<32x64xbf16>, vector<64x32xbf16>, vector<32x32xf32> -> vector<32x32xf32>
    %c0_21 = arith.constant 0 : index
    %c0_22 = arith.constant 0 : index
    %43 = vector.load %arg11[%c0_21, %c0_22] : memref<1x32xf32, #tpu.memory_space<vmem>>, vector<1x32xf32>
    %44 = vector.broadcast %43 : vector<1x32xf32> to vector<32x32xf32>
    %45 = arith.addf %42, %44 : vector<32x32xf32>
    %46 = arith.addf %45, %31 : vector<32x32xf32>
    %cst_23 = arith.constant dense<0.000000e+00> : vector<32xf32>
    %47 = vector.multi_reduction <add>, %46, %cst_23 [1] : vector<32x32xf32> to vector<32xf32>
    %48 = vector.shape_cast %47 : vector<32xf32> to vector<32x1xf32>
    %cst_24 = arith.constant 3.200000e+01 : f32
    %49 = vector.broadcast %cst_24 : f32 to vector<32x1xf32>
    %50 = arith.divf %48, %49 : vector<32x1xf32>
    %51 = vector.broadcast %50 : vector<32x1xf32> to vector<32x32xf32>
    %52 = arith.subf %46, %51 : vector<32x32xf32>
    %53 = arith.mulf %52, %52 : vector<32x32xf32>
    %cst_25 = arith.constant dense<0.000000e+00> : vector<32xf32>
    %54 = vector.multi_reduction <add>, %53, %cst_25 [1] : vector<32x32xf32> to vector<32xf32>
    %55 = vector.shape_cast %54 : vector<32xf32> to vector<32x1xf32>
    %cst_26 = arith.constant 3.200000e+01 : f32
    %56 = vector.broadcast %cst_26 : f32 to vector<32x1xf32>
    %57 = arith.divf %55, %56 : vector<32x1xf32>
    %58 = vector.broadcast %50 : vector<32x1xf32> to vector<32x32xf32>
    %59 = arith.subf %46, %58 : vector<32x32xf32>
    %cst_27 = arith.constant 9.99999997E-7 : f32
    %60 = vector.broadcast %cst_27 : f32 to vector<32x1xf32>
    %61 = arith.addf %57, %60 : vector<32x1xf32>
    %62 = math.rsqrt %61 : vector<32x1xf32>
    %63 = vector.broadcast %62 : vector<32x1xf32> to vector<32x32xf32>
    %64 = arith.mulf %59, %63 : vector<32x32xf32>
    %c0_28 = arith.constant 0 : index
    %c0_29 = arith.constant 0 : index
    %65 = vector.load %arg12[%c0_28, %c0_29] : memref<1x32xf32, #tpu.memory_space<vmem>>, vector<1x32xf32>
    %66 = vector.broadcast %65 : vector<1x32xf32> to vector<32x32xf32>
    %67 = arith.mulf %64, %66 : vector<32x32xf32>
    %c0_30 = arith.constant 0 : index
    %c0_31 = arith.constant 0 : index
    %68 = vector.load %arg13[%c0_30, %c0_31] : memref<1x32xf32, #tpu.memory_space<vmem>>, vector<1x32xf32>
    %69 = vector.broadcast %68 : vector<1x32xf32> to vector<32x32xf32>
    %70 = arith.addf %67, %69 : vector<32x32xf32>
    %c0_32 = arith.constant 0 : index
    %c0_33 = arith.constant 0 : index
    %c0_34 = arith.constant 0 : index
    %71 = vector.load %arg14[%c0_32, %c0_33, %c0_34] : memref<1x32x32xf32, #tpu.memory_space<vmem>>, vector<1x32x32xf32>
    %72 = vector.shape_cast %71 : vector<1x32x32xf32> to vector<32x32xf32>
    %73 = vector.shape_cast %70 : vector<32x32xf32> to vector<1x32x32xf32>
    tpu.vector_store %arg14[%c0_32, %c0_33, %c0_34], %73 {strides = array<i32>} : memref<1x32x32xf32, #tpu.memory_space<vmem>>, vector<1x32x32xf32>,
    return
  }
  func.func @transform_0(%arg0: i32, %arg1: i32) -> (i32, i32, i32) {
    %c0_i32 = arith.constant 0 : i32
    %c0_i32_0 = arith.constant 0 : i32
    return %arg0, %arg1, %c0_i32 : i32, i32, i32
  }
  func.func @transform_1(%arg0: i32, %arg1: i32) -> (i32, i32, i32) {
    %c0_i32 = arith.constant 0 : i32
    %c0_i32_0 = arith.constant 0 : i32
    %c0_i32_1 = arith.constant 0 : i32
    %c0_i32_2 = arith.constant 0 : i32
    return %c0_i32, %c0_i32_0, %c0_i32_1 : i32, i32, i32
  }
  func.func @transform_2(%arg0: i32, %arg1: i32) -> (i32, i32, i32) {
    %c0_i32 = arith.constant 0 : i32
    %c0_i32_0 = arith.constant 0 : i32
    %c0_i32_1 = arith.constant 0 : i32
    %c0_i32_2 = arith.constant 0 : i32
    return %c0_i32, %c0_i32_0, %c0_i32_1 : i32, i32, i32
  }
  func.func @transform_3(%arg0: i32, %arg1: i32) -> (i32, i32, i32) {
    %c0_i32 = arith.constant 0 : i32
    %c0_i32_0 = arith.constant 0 : i32
    %c0_i32_1 = arith.constant 0 : i32
    %c0_i32_2 = arith.constant 0 : i32
    return %c0_i32, %c0_i32_0, %c0_i32_1 : i32, i32, i32
  }
  func.func @transform_4(%arg0: i32, %arg1: i32) -> (i32, i32) {
    %c0_i32 = arith.constant 0 : i32
    %c0_i32_0 = arith.constant 0 : i32
    %c0_i32_1 = arith.constant 0 : i32
    return %c0_i32, %c0_i32_0 : i32, i32
  }
  func.func @transform_5(%arg0: i32, %arg1: i32) -> (i32, i32) {
    %c0_i32 = arith.constant 0 : i32
    %c0_i32_0 = arith.constant 0 : i32
    %c0_i32_1 = arith.constant 0 : i32
    return %c0_i32, %c0_i32_0 : i32, i32
  }
  func.func @transform_6(%arg0: i32, %arg1: i32) -> (i32, i32) {
    %c0_i32 = arith.constant 0 : i32
    %c0_i32_0 = arith.constant 0 : i32
    %c0_i32_1 = arith.constant 0 : i32
    return %c0_i32, %c0_i32_0 : i32, i32
  }
  func.func @transform_7(%arg0: i32, %arg1: i32) -> (i32, i32) {
    %c0_i32 = arith.constant 0 : i32
    %c0_i32_0 = arith.constant 0 : i32
    %c0_i32_1 = arith.constant 0 : i32
    return %c0_i32, %c0_i32_0 : i32, i32
  }
  func.func @transform_8(%arg0: i32, %arg1: i32) -> (i32, i32) {
    %c0_i32 = arith.constant 0 : i32
    %c0_i32_0 = arith.constant 0 : i32
    %c0_i32_1 = arith.constant 0 : i32
    return %c0_i32, %c0_i32_0 : i32, i32
  }
  func.func @transform_9(%arg0: i32, %arg1: i32) -> (i32, i32) {
    %c0_i32 = arith.constant 0 : i32
    %c0_i32_0 = arith.constant 0 : i32
    %c0_i32_1 = arith.constant 0 : i32
    return %c0_i32, %c0_i32_0 : i32, i32
  }
  func.func @transform_10(%arg0: i32, %arg1: i32) -> (i32, i32) {
    %c0_i32 = arith.constant 0 : i32
    %c0_i32_0 = arith.constant 0 : i32
    %c0_i32_1 = arith.constant 0 : i32
    return %c0_i32, %c0_i32_0 : i32, i32
  }
  func.func @transform_11(%arg0: i32, %arg1: i32) -> (i32, i32) {
    %c0_i32 = arith.constant 0 : i32
    %c0_i32_0 = arith.constant 0 : i32
    %c0_i32_1 = arith.constant 0 : i32
    return %c0_i32, %c0_i32_0 : i32, i32
  }
  func.func @transform_12(%arg0: i32, %arg1: i32) -> (i32, i32, i32) {
    %c0_i32 = arith.constant 0 : i32
    %c0_i32_0 = arith.constant 0 : i32
    return %arg0, %arg1, %c0_i32 : i32, i32, i32
  }
  func.func @transform_13(%arg0: i32, %arg1: i32) -> (i32, i32, i32, i32) {
    %c0_i32 = arith.constant 0 : i32
    %c0_i32_0 = arith.constant 0 : i32
    %c0_i32_1 = arith.constant 0 : i32
    return %arg0, %c0_i32, %arg1, %c0_i32_0 : i32, i32, i32, i32
  }
}

</mosaic_0001>

<llo_original>
// kernel: tpu_custom_call.1
$region0: #{tpu_custom_call.1}
  #allocation0 [shape = 'u32[]', space=smem, size = 0x4, offset = 0x4, fixed_abs, tag = 'smem constant byte address 0x4 - core index']
  #allocation1 [shape = 'u32[144,128]{1,0:T(1,128)}', space=vmem, size = 0x12000, scoped, tag = 'internal scratch']
  %s0 = inlined_call_operand.hbm [shape: f32[2,32,32], index: 0, kind: input, shape index: {}]
  %s1 = inlined_call_operand.hbm [shape: bf16[4,32,8], index: 1, kind: input, shape index: {}]
  %s2 = inlined_call_operand.hbm [shape: bf16[4,32,16], index: 2, kind: input, shape index: {}]
  %s3 = inlined_call_operand.hbm [shape: bf16[4,8,32], index: 3, kind: input, shape index: {}]
  %s4 = inlined_call_operand.hbm [shape: f32[1,32], index: 4, kind: input, shape index: {}]
  %s5 = inlined_call_operand.hbm [shape: f32[1,32], index: 5, kind: input, shape index: {}]
  %s6 = inlined_call_operand.hbm [shape: bf16[32,64], index: 6, kind: input, shape index: {}]
  %s7 = inlined_call_operand.hbm [shape: f32[1,64], index: 7, kind: input, shape index: {}]
  %s8 = inlined_call_operand.hbm [shape: bf16[64,32], index: 8, kind: input, shape index: {}]
  %s9 = inlined_call_operand.hbm [shape: f32[1,32], index: 9, kind: input, shape index: {}]
  %s10 = inlined_call_operand.hbm [shape: f32[1,32], index: 10, kind: input, shape index: {}]
  %s11 = inlined_call_operand.hbm [shape: f32[1,32], index: 11, kind: input, shape index: {}]
  %s12 = inlined_call_operand.hbm [shape: f32[2,32,32], index: 12, kind: output, shape index: {0}]
  %s13 = inlined_call_operand.hbm [shape: f32[2,4,32,32], index: 13, kind: output, shape index: {1}]
  %14 = xla_tuple %s12, %s13
  %s15 = sld [smem:[#allocation0]]
  $region144: #{tpu_custom_call.1} parent=0
    _
  %s17 = ssub.s32 1, %s15
  %s18 = scalar_select 0, %s17, %s15
  $region1: #{tpu_custom_call.1} parent=0
    #allocation2 [shape = 'u8[32768]{0}', space=vmem, size = 0x8000, scoped, tag = 'input window, operand 0']
    #allocation3 [shape = 's32[2]{0}', space=sflag, size = 0x8, scoped, tag = 'scoped memory for tpu_custom_call.1']
    #allocation4 [shape = 's32[2]{0}', space=sflag, size = 0x8, scoped, tag = 'scoped memory for tpu_custom_call.1']
    #allocation5 [shape = 'u8[32768]{0}', space=vmem, size = 0x8000, scoped, tag = 'input window, operand 1, single buffered']
    #allocation6 [shape = 's32[1]{0}', space=sflag, size = 0x4, scoped, tag = 'scoped memory for tpu_custom_call.1']
    #allocation7 [shape = 'u8[32768]{0}', space=vmem, size = 0x8000, scoped, tag = 'input window, operand 2, single buffered']
    #allocation8 [shape = 'u8[8192]{0}', space=vmem, size = 0x2000, scoped, tag = 'input window, operand 3, single buffered']
    #allocation9 [shape = 's32[1]{0}', space=sflag, size = 0x4, scoped, tag = 'scoped memory for tpu_custom_call.1']
    #allocation10 [shape = 'u8[512]{0}', space=vmem, size = 0x400, scoped, tag = 'input window, operand 4, single buffered']
    #allocation11 [shape = 'u8[512]{0}', space=vmem, size = 0x400, scoped, tag = 'input window, operand 5, single buffered']
    #allocation12 [shape = 's32[1]{0}', space=sflag, size = 0x4, scoped, tag = 'scoped memory for tpu_custom_call.1']
    #allocation13 [shape = 'u8[8192]{0}', space=vmem, size = 0x2000, scoped, tag = 'input window, operand 6, single buffered']
    #allocation14 [shape = 'u8[512]{0}', space=vmem, size = 0x400, scoped, tag = 'input window, operand 7, single buffered']
    #allocation15 [shape = 's32[1]{0}', space=sflag, size = 0x4, scoped, tag = 'scoped memory for tpu_custom_call.1']
    #allocation16 [shape = 'u8[16384]{0}', space=vmem, size = 0x4000, scoped, tag = 'input window, operand 8, single buffered']
    #allocation17 [shape = 'u8[512]{0}', space=vmem, size = 0x400, scoped, tag = 'input window, operand 9, single buffered']
    #allocation18 [shape = 's32[1]{0}', space=sflag, size = 0x4, scoped, tag = 'scoped memory for tpu_custom_call.1']
    #allocation19 [shape = 'u8[512]{0}', space=vmem, size = 0x400, scoped, tag = 'input window, operand 10, single buffered']
    #allocation20 [shape = 'u8[512]{0}', space=vmem, size = 0x400, scoped, tag = 'input window, operand 11, single buffered']
    #allocation21 [shape = 's32[1]{0}', space=sflag, size = 0x4, scoped, tag = 'scoped memory for tpu_custom_call.1']
    #allocation22 [shape = 'u8[32768]{0}', space=vmem, size = 0x8000, scoped, tag = 'output window, operand 0']
    #allocation23 [shape = 'u8[131072]{0}', space=vmem, size = 0x20000, scoped, tag = 'output window, operand 1']
    #allocation24 [shape = 's32[2]{0}', space=sflag, size = 0x8, scoped, tag = 'scoped memory for tpu_custom_call.1']
    %19 = vsyncpa [#allocation3], 0
    %s20 = scalar_lea.sflag [#allocation3], 1
    %21 = vsyncpa %s20, 0
    %22 = vsyncpa [#allocation6], 0
    %23 = vsyncpa [#allocation9], 0
    %24 = vsyncpa [#allocation12], 0
    %25 = vsyncpa [#allocation15], 0
    %26 = vsyncpa [#allocation18], 0
    %27 = vsyncpa [#allocation21], 0
    %28 = vsyncpa [#allocation4], 0
    %s29 = scalar_lea.sflag [#allocation4], 1
    %30 = vsyncpa %s29, 0
    %31 = vsyncpa [#allocation24], 0
    %s32 = scalar_lea.sflag [#allocation24], 1
    %33 = vsyncpa %s32, 0
    loop: start=0, step=1, limit=4
    $region2: #{tpu_custom_call.1} parent=1 // loop_pre_header
      _
    $region3: #{tpu_custom_call.1} parent=1 // loop_header
      %s35 = sphi 0, %s39
      %p36 = scmp.ge.s32.totalorder %s35, 4
      %s42 = sphi 0, %s54
      %s43 = sphi 0, %s50
      %s44 = sphi 0, %s42
      %s45 = sphi 0, %s43
      %s46 = sphi 0, %s44
      %s47 = sphi 0, %s45
      %s59 = sphi 0, %s61
      %s62 = sphi 0, %s59
      %s63 = sphi 0, %s62
      %s79 = sphi 0, %s63
      %s83 = sphi 0, %s83
      %s85 = sphi 0, %s83
      %s86 = sphi 0, %s85
      %s100 = sphi 0, %s86
      %s104 = sphi 0, %s104
      %s106 = sphi 0, %s104
      %s107 = sphi 0, %s106
      %s121 = sphi 0, %s107
      %s125 = sphi 0, %s125
      %s127 = sphi 0, %s125
      %s128 = sphi 0, %s127
      %s142 = sphi 0, %s128
      %s146 = sphi 0, %s146
      %s148 = sphi 0, %s146
      %s149 = sphi 0, %s148
      %s163 = sphi 0, %s149
      %s167 = sphi 0, %s167
      %s169 = sphi 0, %s167
      %s170 = sphi 0, %s169
      %s184 = sphi 0, %s170
      %s188 = sphi 0, %s188
      %s190 = sphi 0, %s188
      %s191 = sphi 0, %s190
      %s205 = sphi 0, %s191
      %s209 = sphi 0, %s209
      %s211 = sphi 0, %s209
      %s212 = sphi 0, %s211
      %s226 = sphi 0, %s212
      %s230 = sphi 0, %s230
      %s232 = sphi 0, %s230
      %s233 = sphi 0, %s232
      %s247 = sphi 0, %s233
      %s251 = sphi 0, %s251
      %s253 = sphi 0, %s251
      %s254 = sphi 0, %s253
      %s268 = sphi 0, %s254
      %s272 = sphi 0, %s272
      %s274 = sphi 0, %s272
      %s275 = sphi 0, %s274
      %s289 = sphi 0, %s275
      %s293 = sphi 0, %s293
      %s295 = sphi 0, %s293
      %s296 = sphi 0, %s295
      %s310 = sphi 0, %s296
      %s318 = sphi 0, %s320
      %s321 = sphi 0, %s318
      %s322 = sphi 0, %s321
      %s338 = sphi 0, %s322
      %s346 = sphi 0, %s348
      %s349 = sphi 0, %s346
      %s350 = sphi 0, %s349
      %s366 = sphi 0, %s350
    $region4: #{tpu_custom_call.1} parent=1 // loop_header_branch
      %38 = sbr.rel (%p36) target = $region8
    $region5: #{tpu_custom_call.1} parent=1 // loop_body
      %s40 = ssub.s32 %s35, 1
      %s41 = ssub.s32 %s35, 2
      %s48 = sadd.s32 1, %s43
      %p49 = scmp.ge.s32.totalorder %s48, 1
      %s50 = scalar_select %p49, 0, %s48
      %s51 = sadd.s32 1, %s42
      %s52 = scalar_select %p49, %s51, %s42
      %p53 = scmp.ge.s32.totalorder %s52, 2
      %s54 = scalar_select %p53, 0, %s52
      %s55 = ssub.s32 %s42, %s54
      %s56 = ssub.s32 %s43, %s50
      %s57 = sor.u32 %s55, %s56
      %p58 = scmp.eq.s32.totalorder %s57, 0
      %s60 = sadd.s32 %s59, 1
      %s61 = scalar_select %p58, %s59, %s60
      %p64 = pneg %p58
      %p65 = scmp.eq.s32.totalorder %s35, 1
      %p66 = por %p64, %p65
      %p67 = scmp.ne.s32.totalorder %s59, %s62
      %p68 = scmp.eq.s32.totalorder %s35, 0
      %p69 = por %p67, %p68
      %p70 = scmp.ne.s32.totalorder %s59, %s62
      %p71 = scmp.eq.s32.totalorder %s40, 1
      %p72 = por %p70, %p71
      %p73 = scmp.ne.s32.totalorder %s62, %s63
      %p74 = scmp.eq.s32.totalorder %s40, 0
      %p75 = por %p73, %p74
      %p76 = scmp.ne.s32.totalorder %s62, %s63
      %p77 = scmp.eq.s32.totalorder %s41, 1
      %p78 = por %p76, %p77
      %p80 = scmp.ne.s32.totalorder %s63, %s79
      %p81 = scmp.eq.s32.totalorder %s41, 0
      %p82 = por %p80, %p81
      %s84 = sadd.s32 %s83, 1
      %p87 = scmp.eq.s32.totalorder %s35, 1
      %p88 = scmp.ne.s32.totalorder %s83, %s85
      %p89 = scmp.eq.s32.totalorder %s35, 0
      %p90 = por %p88, %p89
      %p91 = scmp.ne.s32.totalorder %s83, %s85
      %p92 = scmp.eq.s32.totalorder %s40, 1
      %p93 = por %p91, %p92
      %p94 = scmp.ne.s32.totalorder %s85, %s86
      %p95 = scmp.eq.s32.totalorder %s40, 0
      %p96 = por %p94, %p95
      %p97 = scmp.ne.s32.totalorder %s85, %s86
      %p98 = scmp.eq.s32.totalorder %s41, 1
      %p99 = por %p97, %p98
      %p101 = scmp.ne.s32.totalorder %s86, %s100
      %p102 = scmp.eq.s32.totalorder %s41, 0
      %p103 = por %p101, %p102
      %s105 = sadd.s32 %s104, 1
      %p108 = scmp.eq.s32.totalorder %s35, 1
      %p109 = scmp.ne.s32.totalorder %s104, %s106
      %p110 = scmp.eq.s32.totalorder %s35, 0
      %p111 = por %p109, %p110
      %p112 = scmp.ne.s32.totalorder %s104, %s106
      %p113 = scmp.eq.s32.totalorder %s40, 1
      %p114 = por %p112, %p113
      %p115 = scmp.ne.s32.totalorder %s106, %s107
      %p116 = scmp.eq.s32.totalorder %s40, 0
      %p117 = por %p115, %p116
      %p118 = scmp.ne.s32.totalorder %s106, %s107
      %p119 = scmp.eq.s32.totalorder %s41, 1
      %p120 = por %p118, %p119
      %p122 = scmp.ne.s32.totalorder %s107, %s121
      %p123 = scmp.eq.s32.totalorder %s41, 0
      %p124 = por %p122, %p123
      %s126 = sadd.s32 %s125, 1
      %p129 = scmp.eq.s32.totalorder %s35, 1
      %p130 = scmp.ne.s32.totalorder %s125, %s127
      %p131 = scmp.eq.s32.totalorder %s35, 0
      %p132 = por %p130, %p131
      %p133 = scmp.ne.s32.totalorder %s125, %s127
      %p134 = scmp.eq.s32.totalorder %s40, 1
      %p135 = por %p133, %p134
      %p136 = scmp.ne.s32.totalorder %s127, %s128
      %p137 = scmp.eq.s32.totalorder %s40, 0
      %p138 = por %p136, %p137
      %p139 = scmp.ne.s32.totalorder %s127, %s128
      %p140 = scmp.eq.s32.totalorder %s41, 1
      %p141 = por %p139, %p140
      %p143 = scmp.ne.s32.totalorder %s128, %s142
      %p144 = scmp.eq.s32.totalorder %s41, 0
      %p145 = por %p143, %p144
      %s147 = sadd.s32 %s146, 1
      %p150 = scmp.eq.s32.totalorder %s35, 1
      %p151 = scmp.ne.s32.totalorder %s146, %s148
      %p152 = scmp.eq.s32.totalorder %s35, 0
      %p153 = por %p151, %p152
      %p154 = scmp.ne.s32.totalorder %s146, %s148
      %p155 = scmp.eq.s32.totalorder %s40, 1
      %p156 = por %p154, %p155
      %p157 = scmp.ne.s32.totalorder %s148, %s149
      %p158 = scmp.eq.s32.totalorder %s40, 0
      %p159 = por %p157, %p158
      %p160 = scmp.ne.s32.totalorder %s148, %s149
      %p161 = scmp.eq.s32.totalorder %s41, 1
      %p162 = por %p160, %p161
      %p164 = scmp.ne.s32.totalorder %s149, %s163
      %p165 = scmp.eq.s32.totalorder %s41, 0
      %p166 = por %p164, %p165
      %s168 = sadd.s32 %s167, 1
      %p171 = scmp.eq.s32.totalorder %s35, 1
      %p172 = scmp.ne.s32.totalorder %s167, %s169
      %p173 = scmp.eq.s32.totalorder %s35, 0
      %p174 = por %p172, %p173
      %p175 = scmp.ne.s32.totalorder %s167, %s169
      %p176 = scmp.eq.s32.totalorder %s40, 1
      %p177 = por %p175, %p176
      %p178 = scmp.ne.s32.totalorder %s169, %s170
      %p179 = scmp.eq.s32.totalorder %s40, 0
      %p180 = por %p178, %p179
      %p181 = scmp.ne.s32.totalorder %s169, %s170
      %p182 = scmp.eq.s32.totalorder %s41, 1
      %p183 = por %p181, %p182
      %p185 = scmp.ne.s32.totalorder %s170, %s184
      %p186 = scmp.eq.s32.totalorder %s41, 0
      %p187 = por %p185, %p186
      %s189 = sadd.s32 %s188, 1
      %p192 = scmp.eq.s32.totalorder %s35, 1
      %p193 = scmp.ne.s32.totalorder %s188, %s190
      %p194 = scmp.eq.s32.totalorder %s35, 0
      %p195 = por %p193, %p194
      %p196 = scmp.ne.s32.totalorder %s188, %s190
      %p197 = scmp.eq.s32.totalorder %s40, 1
      %p198 = por %p196, %p197
      %p199 = scmp.ne.s32.totalorder %s190, %s191
      %p200 = scmp.eq.s32.totalorder %s40, 0
      %p201 = por %p199, %p200
      %p202 = scmp.ne.s32.totalorder %s190, %s191
      %p203 = scmp.eq.s32.totalorder %s41, 1
      %p204 = por %p202, %p203
      %p206 = scmp.ne.s32.totalorder %s191, %s205
      %p207 = scmp.eq.s32.totalorder %s41, 0
      %p208 = por %p206, %p207
      %s210 = sadd.s32 %s209, 1
      %p213 = scmp.eq.s32.totalorder %s35, 1
      %p214 = scmp.ne.s32.totalorder %s209, %s211
      %p215 = scmp.eq.s32.totalorder %s35, 0
      %p216 = por %p214, %p215
      %p217 = scmp.ne.s32.totalorder %s209, %s211
      %p218 = scmp.eq.s32.totalorder %s40, 1
      %p219 = por %p217, %p218
      %p220 = scmp.ne.s32.totalorder %s211, %s212
      %p221 = scmp.eq.s32.totalorder %s40, 0
      %p222 = por %p220, %p221
      %p223 = scmp.ne.s32.totalorder %s211, %s212
      %p224 = scmp.eq.s32.totalorder %s41, 1
      %p225 = por %p223, %p224
      %p227 = scmp.ne.s32.totalorder %s212, %s226
      %p228 = scmp.eq.s32.totalorder %s41, 0
      %p229 = por %p227, %p228
      %s231 = sadd.s32 %s230, 1
      %p234 = scmp.eq.s32.totalorder %s35, 1
      %p235 = scmp.ne.s32.totalorder %s230, %s232
      %p236 = scmp.eq.s32.totalorder %s35, 0
      %p237 = por %p235, %p236
      %p238 = scmp.ne.s32.totalorder %s230, %s232
      %p239 = scmp.eq.s32.totalorder %s40, 1
      %p240 = por %p238, %p239
      %p241 = scmp.ne.s32.totalorder %s232, %s233
      %p242 = scmp.eq.s32.totalorder %s40, 0
      %p243 = por %p241, %p242
      %p244 = scmp.ne.s32.totalorder %s232, %s233
      %p245 = scmp.eq.s32.totalorder %s41, 1
      %p246 = por %p244, %p245
      %p248 = scmp.ne.s32.totalorder %s233, %s247
      %p249 = scmp.eq.s32.totalorder %s41, 0
      %p250 = por %p248, %p249
      %s252 = sadd.s32 %s251, 1
      %p255 = scmp.eq.s32.totalorder %s35, 1
      %p256 = scmp.ne.s32.totalorder %s251, %s253
      %p257 = scmp.eq.s32.totalorder %s35, 0
      %p258 = por %p256, %p257
      %p259 = scmp.ne.s32.totalorder %s251, %s253
      %p260 = scmp.eq.s32.totalorder %s40, 1
      %p261 = por %p259, %p260
      %p262 = scmp.ne.s32.totalorder %s253, %s254
      %p263 = scmp.eq.s32.totalorder %s40, 0
      %p264 = por %p262, %p263
      %p265 = scmp.ne.s32.totalorder %s253, %s254
      %p266 = scmp.eq.s32.totalorder %s41, 1
      %p267 = por %p265, %p266
      %p269 = scmp.ne.s32.totalorder %s254, %s268
      %p270 = scmp.eq.s32.totalorder %s41, 0
      %p271 = por %p269, %p270
      %s273 = sadd.s32 %s272, 1
      %p276 = scmp.eq.s32.totalorder %s35, 1
      %p277 = scmp.ne.s32.totalorder %s272, %s274
      %p278 = scmp.eq.s32.totalorder %s35, 0
      %p279 = por %p277, %p278
      %p280 = scmp.ne.s32.totalorder %s272, %s274
      %p281 = scmp.eq.s32.totalorder %s40, 1
      %p282 = por %p280, %p281
      %p283 = scmp.ne.s32.totalorder %s274, %s275
      %p284 = scmp.eq.s32.totalorder %s40, 0
      %p285 = por %p283, %p284
      %p286 = scmp.ne.s32.totalorder %s274, %s275
      %p287 = scmp.eq.s32.totalorder %s41, 1
      %p288 = por %p286, %p287
      %p290 = scmp.ne.s32.totalorder %s275, %s289
      %p291 = scmp.eq.s32.totalorder %s41, 0
      %p292 = por %p290, %p291
      %s294 = sadd.s32 %s293, 1
      %p297 = scmp.eq.s32.totalorder %s35, 1
      %p298 = scmp.ne.s32.totalorder %s293, %s295
      %p299 = scmp.eq.s32.totalorder %s35, 0
      %p300 = por %p298, %p299
      %p301 = scmp.ne.s32.totalorder %s293, %s295
      %p302 = scmp.eq.s32.totalorder %s40, 1
      %p303 = por %p301, %p302
      %p304 = scmp.ne.s32.totalorder %s295, %s296
      %p305 = scmp.eq.s32.totalorder %s40, 0
      %p306 = por %p304, %p305
      %p307 = scmp.ne.s32.totalorder %s295, %s296
      %p308 = scmp.eq.s32.totalorder %s41, 1
      %p309 = por %p307, %p308
      %p311 = scmp.ne.s32.totalorder %s296, %s310
      %p312 = scmp.eq.s32.totalorder %s41, 0
      %p313 = por %p311, %p312
      %s314 = ssub.s32 %s42, %s54
      %s315 = ssub.s32 %s43, %s50
      %s316 = sor.u32 %s314, %s315
      %p317 = scmp.eq.s32.totalorder %s316, 0
      %s319 = sadd.s32 %s318, 1
      %s320 = scalar_select %p317, %s318, %s319
      %p323 = pneg %p317
      %p324 = scmp.eq.s32.totalorder %s35, 1
      %p325 = por %p323, %p324
      %p326 = scmp.ne.s32.totalorder %s318, %s321
      %p327 = scmp.eq.s32.totalorder %s35, 0
      %p328 = por %p326, %p327
      %p329 = scmp.ne.s32.totalorder %s318, %s321
      %p330 = scmp.eq.s32.totalorder %s40, 1
      %p331 = por %p329, %p330
      %p332 = scmp.ne.s32.totalorder %s321, %s322
      %p333 = scmp.eq.s32.totalorder %s40, 0
      %p334 = por %p332, %p333
      %p335 = scmp.ne.s32.totalorder %s321, %s322
      %p336 = scmp.eq.s32.totalorder %s41, 1
      %p337 = por %p335, %p336
      %p339 = scmp.ne.s32.totalorder %s322, %s338
      %p340 = scmp.eq.s32.totalorder %s41, 0
      %p341 = por %p339, %p340
      %s342 = ssub.s32 %s42, %s54
      %s343 = ssub.s32 %s43, %s50
      %s344 = sor.u32 %s342, %s343
      %p345 = scmp.eq.s32.totalorder %s344, 0
      %s347 = sadd.s32 %s346, 1
      %s348 = scalar_select %p345, %s346, %s347
      %p351 = pneg %p345
      %p352 = scmp.eq.s32.totalorder %s35, 1
      %p353 = por %p351, %p352
      %p354 = scmp.ne.s32.totalorder %s346, %s349
      %p355 = scmp.eq.s32.totalorder %s35, 0
      %p356 = por %p354, %p355
      %p357 = scmp.ne.s32.totalorder %s346, %s349
      %p358 = scmp.eq.s32.totalorder %s40, 1
      %p359 = por %p357, %p358
      %p360 = scmp.ne.s32.totalorder %s349, %s350
      %p361 = scmp.eq.s32.totalorder %s40, 0
      %p362 = por %p360, %p361
      %p363 = scmp.ne.s32.totalorder %s349, %s350
      %p364 = scmp.eq.s32.totalorder %s41, 1
      %p365 = por %p363, %p364
      %p367 = scmp.ne.s32.totalorder %s350, %s366
      %p368 = scmp.eq.s32.totalorder %s41, 0
      %p369 = por %p367, %p368
      %p370 = scmp.le.s32.totalorder 1, %s35
      %p371 = scmp.lt.s32.totalorder %s35, 3
      %p372 = pnand %p370, %p371
      %p373 = pneg %p372
      // Predicated region
      $region9: #{tpu_custom_call.1} parent=5 // pred_check
        _
      $region10: #{tpu_custom_call.1} parent=5 // pred_check_branch
        %375 = sbr.rel (%p372) target = $region12
      $region11: #{tpu_custom_call.1} parent=5 // pred_region
        %s376 = ssub.s32 %s35, 1
        // Predicated region
        $region13: #{tpu_custom_call.1} parent=11 // pred_check
          %p377 = pneg %p96
        $region14: #{tpu_custom_call.1} parent=11 // pred_check_branch
          %379 = sbr.rel (%p377) target = $region16
        $region15: #{tpu_custom_call.1} parent=11 // pred_region
          %s381 = ssub.s32 1024, 1024
          %382 = vsyncadd [#allocation6], %s381
          %s383 = sshll.u32 [#allocation5], 4
          %s384 = int_to_ptr.vmem [resolvable:$true] %s383
          %389 = dma.hbm_to_vmem [thread:$0]  %s1, 1024, %s384, [#allocation6], 64, 64, 4
        $region16: #{tpu_custom_call.1} parent=11 // pred_fallthru
          _
        // Predicated region
        $region17: #{tpu_custom_call.1} parent=11 // pred_check
          %p390 = pneg %p117
        $region18: #{tpu_custom_call.1} parent=11 // pred_check_branch
          %392 = sbr.rel (%p390) target = $region20
        $region19: #{tpu_custom_call.1} parent=11 // pred_region
          %s394 = ssub.s32 1024, 1024
          %395 = vsyncadd [#allocation6], %s394
          %s396 = sshll.u32 [#allocation7], 4
          %s397 = int_to_ptr.vmem [resolvable:$true] %s396
          %402 = dma.hbm_to_vmem [thread:$0]  %s2, 1024, %s397, [#allocation6], 64, 64, 4
        $region20: #{tpu_custom_call.1} parent=11 // pred_fallthru
          _
        // Predicated region
        $region21: #{tpu_custom_call.1} parent=11 // pred_check
          %p403 = pneg %p138
        $region22: #{tpu_custom_call.1} parent=11 // pred_check_branch
          %405 = sbr.rel (%p403) target = $region24
        $region23: #{tpu_custom_call.1} parent=11 // pred_region
          %s407 = ssub.s32 256, 256
          %408 = vsyncadd [#allocation9], %s407
          %s409 = sshll.u32 [#allocation8], 4
          %s410 = int_to_ptr.vmem [resolvable:$true] %s409
          %415 = dma.hbm_to_vmem [thread:$0]  %s3, 256, %s410, [#allocation9], 64, 64, 4
        $region24: #{tpu_custom_call.1} parent=11 // pred_fallthru
          _
        // Predicated region
        $region25: #{tpu_custom_call.1} parent=11 // pred_check
          %p416 = pneg %p159
        $region26: #{tpu_custom_call.1} parent=11 // pred_check_branch
          %418 = sbr.rel (%p416) target = $region28
        $region27: #{tpu_custom_call.1} parent=11 // pred_region
          %s420 = ssub.s32 16, 16
          %421 = vsyncadd [#allocation9], %s420
          %s423 = sshll.u32 [#allocation10], 4
          %s424 = int_to_ptr.vmem [resolvable:$true] %s423
          %426 = dma.hbm_to_vmem [thread:$0]  %s4, 16, %s424, [#allocation9]
        $region28: #{tpu_custom_call.1} parent=11 // pred_fallthru
          _
        // Predicated region
        $region29: #{tpu_custom_call.1} parent=11 // pred_check
          %p427 = pneg %p180
        $region30: #{tpu_custom_call.1} parent=11 // pred_check_branch
          %429 = sbr.rel (%p427) target = $region32
        $region31: #{tpu_custom_call.1} parent=11 // pred_region
          %s431 = ssub.s32 16, 16
          %432 = vsyncadd [#allocation12], %s431
          %s434 = sshll.u32 [#allocation11], 4
          %s435 = int_to_ptr.vmem [resolvable:$true] %s434
          %437 = dma.hbm_to_vmem [thread:$0]  %s5, 16, %s435, [#allocation12]
        $region32: #{tpu_custom_call.1} parent=11 // pred_fallthru
          _
        // Predicated region
        $region33: #{tpu_custom_call.1} parent=11 // pred_check
          %p438 = pneg %p201
        $region34: #{tpu_custom_call.1} parent=11 // pred_check_branch
          %440 = sbr.rel (%p438) target = $region36
        $region35: #{tpu_custom_call.1} parent=11 // pred_region
          %s442 = ssub.s32 256, 256
          %443 = vsyncadd [#allocation12], %s442
          %s444 = sshll.u32 [#allocation13], 4
          %s445 = int_to_ptr.vmem [resolvable:$true] %s444
          %450 = dma.hbm_to_vmem [thread:$0]  %s6, 256, %s445, [#allocation12], 64, 64, 4
        $region36: #{tpu_custom_call.1} parent=11 // pred_fallthru
          _
        // Predicated region
        $region37: #{tpu_custom_call.1} parent=11 // pred_check
          %p451 = pneg %p222
        $region38: #{tpu_custom_call.1} parent=11 // pred_check_branch
          %453 = sbr.rel (%p451) target = $region40
        $region39: #{tpu_custom_call.1} parent=11 // pred_region
          %s455 = ssub.s32 16, 16
          %456 = vsyncadd [#allocation15], %s455
          %s458 = sshll.u32 [#allocation14], 4
          %s459 = int_to_ptr.vmem [resolvable:$true] %s458
          %461 = dma.hbm_to_vmem [thread:$0]  %s7, 16, %s459, [#allocation15]
        $region40: #{tpu_custom_call.1} parent=11 // pred_fallthru
          _
        // Predicated region
        $region41: #{tpu_custom_call.1} parent=11 // pred_check
          %p462 = pneg %p243
        $region42: #{tpu_custom_call.1} parent=11 // pred_check_branch
          %464 = sbr.rel (%p462) target = $region44
        $region43: #{tpu_custom_call.1} parent=11 // pred_region
          %s466 = ssub.s32 512, 512
          %467 = vsyncadd [#allocation15], %s466
          %s468 = sshll.u32 [#allocation16], 4
          %s469 = int_to_ptr.vmem [resolvable:$true] %s468
          %474 = dma.hbm_to_vmem [thread:$0]  %s8, 512, %s469, [#allocation15], 64, 64, 4
        $region44: #{tpu_custom_call.1} parent=11 // pred_fallthru
          _
        // Predicated region
        $region45: #{tpu_custom_call.1} parent=11 // pred_check
          %p475 = pneg %p264
        $region46: #{tpu_custom_call.1} parent=11 // pred_check_branch
          %477 = sbr.rel (%p475) target = $region48
        $region47: #{tpu_custom_call.1} parent=11 // pred_region
          %s479 = ssub.s32 16, 16
          %480 = vsyncadd [#allocation18], %s479
          %s482 = sshll.u32 [#allocation17], 4
          %s483 = int_to_ptr.vmem [resolvable:$true] %s482
          %485 = dma.hbm_to_vmem [thread:$0]  %s9, 16, %s483, [#allocation18]
        $region48: #{tpu_custom_call.1} parent=11 // pred_fallthru
          _
        // Predicated region
        $region49: #{tpu_custom_call.1} parent=11 // pred_check
          %p486 = pneg %p285
        $region50: #{tpu_custom_call.1} parent=11 // pred_check_branch
          %488 = sbr.rel (%p486) target = $region52
        $region51: #{tpu_custom_call.1} parent=11 // pred_region
          %s490 = ssub.s32 16, 16
          %491 = vsyncadd [#allocation18], %s490
          %s493 = sshll.u32 [#allocation19], 4
          %s494 = int_to_ptr.vmem [resolvable:$true] %s493
          %496 = dma.hbm_to_vmem [thread:$0]  %s10, 16, %s494, [#allocation18]
        $region52: #{tpu_custom_call.1} parent=11 // pred_fallthru
          _
        // Predicated region
        $region53: #{tpu_custom_call.1} parent=11 // pred_check
          %p497 = pneg %p306
        $region54: #{tpu_custom_call.1} parent=11 // pred_check_branch
          %499 = sbr.rel (%p497) target = $region56
        $region55: #{tpu_custom_call.1} parent=11 // pred_region
          %s501 = ssub.s32 16, 16
          %502 = vsyncadd [#allocation21], %s501
          %s504 = sshll.u32 [#allocation20], 4
          %s505 = int_to_ptr.vmem [resolvable:$true] %s504
          %507 = dma.hbm_to_vmem [thread:$0]  %s11, 16, %s505, [#allocation21]
        $region56: #{tpu_custom_call.1} parent=11 // pred_fallthru
          _
      $region12: #{tpu_custom_call.1} parent=5 // pred_fallthru
        _
      %p508 = scmp.lt.s32.totalorder %s35, 2
      // Predicated region
      $region57: #{tpu_custom_call.1} parent=5 // pred_check
        %p509 = pneg %p508
      $region58: #{tpu_custom_call.1} parent=5 // pred_check_branch
        %511 = sbr.rel (%p509) target = $region60
      $region59: #{tpu_custom_call.1} parent=5 // pred_region
        // Predicated region
        $region61: #{tpu_custom_call.1} parent=59 // pred_check
          %p512 = pneg %p69
        $region62: #{tpu_custom_call.1} parent=59 // pred_check_branch
          %514 = sbr.rel (%p512) target = $region64
        $region63: #{tpu_custom_call.1} parent=59 // pred_region
          %s515 = sand.u32 %s59, 1
          %s516 = scalar_lea.sflag [#allocation3], %s515
          %s517 = sand.u32 %s59, 1
          %s518 = smul.addr %s517, 32
          %s519 = scalar_lea.vmem [#allocation2], %s518
          %s520 = smul.u32 4, %s43
          %s522 = ssub.s32 512, 512
          %523 = vsyncadd %s516, %s522
          %s524 = smul.addr %s42, 4
          %s525 = sadd.s32 %s520, %s524
          %s526 = smul.addr %s525, 128
          %s527 = scalar_lea.hbm %s0, %s526
          %s528 = sshll.u32 %s519, 4
          %s529 = int_to_ptr.vmem [resolvable:$true] %s528
          %534 = dma.hbm_to_vmem [thread:$0]  %s527, 512, %s529, %s516, 128, 128, 8
        $region64: #{tpu_custom_call.1} parent=59 // pred_fallthru
          _
      $region60: #{tpu_custom_call.1} parent=5 // pred_fallthru
        _
      %p535 = scmp.le.s32.totalorder 1, %s35
      %p536 = scmp.lt.s32.totalorder %s35, 3
      %p537 = pnand %p535, %p536
      %p538 = pneg %p537
      // Predicated region
      $region65: #{tpu_custom_call.1} parent=5 // pred_check
        _
      $region66: #{tpu_custom_call.1} parent=5 // pred_check_branch
        %540 = sbr.rel (%p537) target = $region68
      $region67: #{tpu_custom_call.1} parent=5 // pred_region
        %s541 = ssub.s32 %s35, 1
        %s542 = sand.u32 %s62, 1
        %s543 = scalar_lea.sflag [#allocation3], %s542
        %s544 = sand.u32 %s62, 1
        %s545 = smul.addr %s544, 32
        %s546 = scalar_lea.vmem [#allocation2], %s545
        // Predicated region
        $region69: #{tpu_custom_call.1} parent=67 // pred_check
          %p547 = pneg %p75
        $region70: #{tpu_custom_call.1} parent=67 // pred_check_branch
          %549 = sbr.rel (%p547) target = $region72
        $region71: #{tpu_custom_call.1} parent=67 // pred_region
          %550 = dma.done %s543, 512
        $region72: #{tpu_custom_call.1} parent=67 // pred_fallthru
          _
        // Predicated region
        $region73: #{tpu_custom_call.1} parent=67 // pred_check
          %p551 = pneg %p96
        $region74: #{tpu_custom_call.1} parent=67 // pred_check_branch
          %553 = sbr.rel (%p551) target = $region76
        $region75: #{tpu_custom_call.1} parent=67 // pred_region
          %554 = dma.done [#allocation6], 1024
        $region76: #{tpu_custom_call.1} parent=67 // pred_fallthru
          _
        // Predicated region
        $region77: #{tpu_custom_call.1} parent=67 // pred_check
          %p555 = pneg %p117
        $region78: #{tpu_custom_call.1} parent=67 // pred_check_branch
          %557 = sbr.rel (%p555) target = $region80
        $region79: #{tpu_custom_call.1} parent=67 // pred_region
          %558 = dma.done [#allocation6], 1024
        $region80: #{tpu_custom_call.1} parent=67 // pred_fallthru
          _
        // Predicated region
        $region81: #{tpu_custom_call.1} parent=67 // pred_check
          %p559 = pneg %p138
        $region82: #{tpu_custom_call.1} parent=67 // pred_check_branch
          %561 = sbr.rel (%p559) target = $region84
        $region83: #{tpu_custom_call.1} parent=67 // pred_region
          %562 = dma.done [#allocation9], 256
        $region84: #{tpu_custom_call.1} parent=67 // pred_fallthru
          _
        // Predicated region
        $region85: #{tpu_custom_call.1} parent=67 // pred_check
          %p563 = pneg %p159
        $region86: #{tpu_custom_call.1} parent=67 // pred_check_branch
          %565 = sbr.rel (%p563) target = $region88
        $region87: #{tpu_custom_call.1} parent=67 // pred_region
          %566 = dma.done [#allocation9], 16
        $region88: #{tpu_custom_call.1} parent=67 // pred_fallthru
          _
        // Predicated region
        $region89: #{tpu_custom_call.1} parent=67 // pred_check
          %p567 = pneg %p180
        $region90: #{tpu_custom_call.1} parent=67 // pred_check_branch
          %569 = sbr.rel (%p567) target = $region92
        $region91: #{tpu_custom_call.1} parent=67 // pred_region
          %570 = dma.done [#allocation12], 16
        $region92: #{tpu_custom_call.1} parent=67 // pred_fallthru
          _
        // Predicated region
        $region93: #{tpu_custom_call.1} parent=67 // pred_check
          %p571 = pneg %p201
        $region94: #{tpu_custom_call.1} parent=67 // pred_check_branch
          %573 = sbr.rel (%p571) target = $region96
        $region95: #{tpu_custom_call.1} parent=67 // pred_region
          %574 = dma.done [#allocation12], 256
        $region96: #{tpu_custom_call.1} parent=67 // pred_fallthru
          _
        // Predicated region
        $region97: #{tpu_custom_call.1} parent=67 // pred_check
          %p575 = pneg %p222
        $region98: #{tpu_custom_call.1} parent=67 // pred_check_branch
          %577 = sbr.rel (%p575) target = $region100
        $region99: #{tpu_custom_call.1} parent=67 // pred_region
          %578 = dma.done [#allocation15], 16
        $region100: #{tpu_custom_call.1} parent=67 // pred_fallthru
          _
        // Predicated region
        $region101: #{tpu_custom_call.1} parent=67 // pred_check
          %p579 = pneg %p243
        $region102: #{tpu_custom_call.1} parent=67 // pred_check_branch
          %581 = sbr.rel (%p579) target = $region104
        $region103: #{tpu_custom_call.1} parent=67 // pred_region
          %582 = dma.done [#allocation15], 512
        $region104: #{tpu_custom_call.1} parent=67 // pred_fallthru
          _
        // Predicated region
        $region105: #{tpu_custom_call.1} parent=67 // pred_check
          %p583 = pneg %p264
        $region106: #{tpu_custom_call.1} parent=67 // pred_check_branch
          %585 = sbr.rel (%p583) target = $region108
        $region107: #{tpu_custom_call.1} parent=67 // pred_region
          %586 = dma.done [#allocation18], 16
        $region108: #{tpu_custom_call.1} parent=67 // pred_fallthru
          _
        // Predicated region
        $region109: #{tpu_custom_call.1} parent=67 // pred_check
          %p587 = pneg %p285
        $region110: #{tpu_custom_call.1} parent=67 // pred_check_branch
          %589 = sbr.rel (%p587) target = $region112
        $region111: #{tpu_custom_call.1} parent=67 // pred_region
          %590 = dma.done [#allocation18], 16
        $region112: #{tpu_custom_call.1} parent=67 // pred_fallthru
          _
        // Predicated region
        $region113: #{tpu_custom_call.1} parent=67 // pred_check
          %p591 = pneg %p306
        $region114: #{tpu_custom_call.1} parent=67 // pred_check_branch
          %593 = sbr.rel (%p591) target = $region116
        $region115: #{tpu_custom_call.1} parent=67 // pred_region
          %594 = dma.done [#allocation21], 16
        $region116: #{tpu_custom_call.1} parent=67 // pred_fallthru
          _
        %s595 = sand.u32 %s62, 1
        %s596 = scalar_lea.sflag [#allocation3], %s595
        %s597 = sand.u32 %s62, 1
        %s598 = smul.addr %s597, 32
        %s599 = scalar_lea.vmem [#allocation2], %s598
        %p600 = pneg %p75
        %p601 = pneg %p72
        %p602 = pneg %p96
        %p603 = pneg %p93
        %p604 = pneg %p117
        %p605 = pneg %p114
        %p606 = pneg %p138
        %p607 = pneg %p135
        %p608 = pneg %p159
        %p609 = pneg %p156
        %p610 = pneg %p180
        %p611 = pneg %p177
        %p612 = pneg %p201
        %p613 = pneg %p198
        %p614 = pneg %p222
        %p615 = pneg %p219
        %p616 = pneg %p243
        %p617 = pneg %p240
        %p618 = pneg %p264
        %p619 = pneg %p261
        %p620 = pneg %p285
        %p621 = pneg %p282
        %p622 = pneg %p306
        %p623 = pneg %p303
        %p624 = pneg %p334
        %p625 = pneg %p331
        %s626 = sand.u32 %s321, 1
        %s627 = scalar_lea.sflag [#allocation4], %s626
        %s628 = sand.u32 %s321, 1
        %s629 = smul.addr %s628, 32
        %s630 = scalar_lea.vmem [#allocation22], %s629
        %p631 = pneg %p362
        %p632 = pneg %p359
        %s633 = sand.u32 %s349, 1
        %s634 = scalar_lea.sflag [#allocation24], %s633
        %s635 = sand.u32 %s349, 1
        %s636 = smul.addr %s635, 128
        %s637 = scalar_lea.vmem [#allocation23], %s636
        %s638 = smul.u32 4, %s45
        %s639 = smul.u32 4, %s45
        %s640 = smul.u32 4, %s45
        %v642 = vld [vmem:[%s546] sm:$0xff]
        %v643 = vld [vmem:[%s546 + $0x8] sm:$0xff]
        %v644 = vld [vmem:[%s546 + $0x10] sm:$0xff]
        %v645 = vld [vmem:[%s546 + $0x18] sm:$0xff]
        %v646 = vpack.c.bf16 %v643, %v642
        %v647 = vpack.c.bf16 %v645, %v644
        loop: start=0, step=1, limit=4
        $region117: #{tpu_custom_call.1} parent=67 // loop_pre_header
          _
        $region118: #{tpu_custom_call.1} parent=67 // loop_header
          %s649 = sphi 0, %s653
          %p650 = scmp.ge.s32.totalorder %s649, 4
          %v654 = vphi 0.0, %v1045
          %v655 = vphi 0.0, %v1046
          %v656 = vphi 0.0, %v1047
          %v657 = vphi 0.0, %v1048
        $region119: #{tpu_custom_call.1} parent=67 // loop_header_branch
          %652 = sbr.rel (%p650) target = $region123
        $region120: #{tpu_custom_call.1} parent=67 // loop_body
          %s658 = smul.u32 %s649, 4
          %s659 = smul.addr %s658, 4
          %s660 = scalar_lea.vmem [#allocation5], %s659
          %v661 = vld [vmem:[%s660] sm:$0xf]
          %v662 = vld [vmem:[%s660 + $0x4] sm:$0xf]
          %v663 = vld [vmem:[%s660 + $0x8] sm:$0xf]
          %v664 = vld [vmem:[%s660 + $0xc] sm:$0xf]
          %v669 = vunpack.c.l.b16 %v661
          %v670 = vunpack.c.l.b16 %v662
          %v671 = vunpack.c.l.b16 %v663
          %v672 = vunpack.c.l.b16 %v664
          %v673 = vpack.c.b16 %v670, %v669
          %v674 = vpack.c.b16 %v672, %v671
          %vm677 = vcmask 261120
          %v679 = vsel %vm677, %v646, 0
          %v682 = vsel %vm677, %v647, 0
          %684 = vmatprep.subr.bf16.mxu0 0
          %685 = vmatpush1.bf16.msra.mxu0 %v673
          %686 = vmatprep.subr.bf16.mxu0 0
          %687 = vmatpush1.bf16.msra.mxu0 %v674
          %688 = vmatprep.subr.bf16.mxu0 0
          %689 = vmatpush1.bf16.msra.mxu0 0
          %690 = vmatprep.subr.bf16.mxu0 0
          %691 = vmatpush1.bf16.msra.mxu0 0
          %692 = vmatprep.subr.bf16.mxu0 0
          %693 = vmatpush1.bf16.msra.mxu0 0
          %694 = vmatprep.subr.bf16.mxu0 0
          %695 = vmatpush1.bf16.msra.mxu0 0
          %696 = vmatprep.subr.bf16.mxu0 0
          %697 = vmatpush1.bf16.msra.mxu0 0
          %698 = vmatprep.subr.bf16.mxu0 0
          %699 = vmatpush1.bf16.msra.mxu0 0
          %700 = vmatprep.subr.bf16.mxu0 0
          %701 = vmatpush1.bf16.msra.mxu0 0
          %702 = vmatprep.subr.bf16.mxu0 0
          %703 = vmatpush1.bf16.msra.mxu0 0
          %704 = vmatprep.subr.bf16.mxu0 0
          %705 = vmatpush1.bf16.msra.mxu0 0
          %706 = vmatprep.subr.bf16.mxu0 0
          %707 = vmatpush1.bf16.msra.mxu0 0
          %708 = vmatprep.subr.bf16.mxu0 0
          %709 = vmatpush1.bf16.msra.mxu0 0
          %710 = vmatprep.subr.bf16.mxu0 0
          %711 = vmatpush1.bf16.msra.mxu0 0
          %712 = vmatprep.subr.bf16.mxu0 0
          %713 = vmatpush1.bf16.msra.mxu0 0
          %714 = vmatprep.subr.bf16.mxu0 0
          %715 = vmatpush1.bf16.msra.mxu0 0
          %716 = vmatprep.mubr.bf16.mxu0 0
          %717 = vmatmul.mubr.bf16.gmra.mrb[0].mxu0 %v679
          %v718 = vpop.f32.mrb[0].mxu0
          %v719 = vadd.f32 0.0, %v718
          %v720 = vpop.f32.mrb[0].mxu0
          %v721 = vpop.f32.mrb[0].mxu0
          %v722 = vadd.f32 0.0, %v721
          %v723 = vpop.f32.mrb[0].mxu0
          %724 = vmatprep.mubr.bf16.mxu0 0
          %725 = vmatmul.mubr.bf16.gmra.mrb[0].mxu0 %v682
          %v726 = vpop.f32.mrb[0].mxu0
          %v727 = vadd.f32 0.0, %v726
          %v728 = vpop.f32.mrb[0].mxu0
          %v729 = vpop.f32.mrb[0].mxu0
          %v730 = vadd.f32 0.0, %v729
          %v731 = vpop.f32.mrb[0].mxu0
          %732 = vdwg.mxu0
          %s733 = smul.addr %s658, 4
          %s734 = scalar_lea.vmem [#allocation7], %s733
          %v735 = vld [vmem:[%s734] sm:$0xf]
          %v736 = vld [vmem:[%s734 + $0x4] sm:$0xf]
          %v737 = vld [vmem:[%s734 + $0x8] sm:$0xf]
          %v738 = vld [vmem:[%s734 + $0xc] sm:$0xf]
          %v743 = vunpack.c.l.b16 %v735
          %v744 = vunpack.c.l.b16 %v736
          %v745 = vunpack.c.l.b16 %v737
          %v746 = vunpack.c.l.b16 %v738
          %v747 = vpack.c.b16 %v744, %v743
          %v748 = vpack.c.b16 %v746, %v745
          %751 = vmatprep.subr.bf16.mxu0 0
          %752 = vmatpush1.bf16.msra.mxu0 %v747
          %753 = vmatprep.subr.bf16.mxu0 0
          %754 = vmatpush1.bf16.msra.mxu0 %v748
          %755 = vmatprep.subr.bf16.mxu0 0
          %756 = vmatpush1.bf16.msra.mxu0 0
          %757 = vmatprep.subr.bf16.mxu0 0
          %758 = vmatpush1.bf16.msra.mxu0 0
          %759 = vmatprep.subr.bf16.mxu0 0
          %760 = vmatpush1.bf16.msra.mxu0 0
          %761 = vmatprep.subr.bf16.mxu0 0
          %762 = vmatpush1.bf16.msra.mxu0 0
          %763 = vmatprep.subr.bf16.mxu0 0
          %764 = vmatpush1.bf16.msra.mxu0 0
          %765 = vmatprep.subr.bf16.mxu0 0
          %766 = vmatpush1.bf16.msra.mxu0 0
          %767 = vmatprep.subr.bf16.mxu0 0
          %768 = vmatpush1.bf16.msra.mxu0 0
          %769 = vmatprep.subr.bf16.mxu0 0
          %770 = vmatpush1.bf16.msra.mxu0 0
          %771 = vmatprep.subr.bf16.mxu0 0
          %772 = vmatpush1.bf16.msra.mxu0 0
          %773 = vmatprep.subr.bf16.mxu0 0
          %774 = vmatpush1.bf16.msra.mxu0 0
          %775 = vmatprep.subr.bf16.mxu0 0
          %776 = vmatpush1.bf16.msra.mxu0 0
          %777 = vmatprep.subr.bf16.mxu0 0
          %778 = vmatpush1.bf16.msra.mxu0 0
          %779 = vmatprep.subr.bf16.mxu0 0
          %780 = vmatpush1.bf16.msra.mxu0 0
          %781 = vmatprep.subr.bf16.mxu0 0
          %782 = vmatpush1.bf16.msra.mxu0 0
          %783 = vmatprep.mubr.bf16.mxu0 0
          %784 = vmatmul.mubr.bf16.gmra.mrb[0].mxu0 %v679
          %v785 = vpop.f32.mrb[0].mxu0
          %v786 = vadd.f32 0.0, %v785
          %v787 = vpop.f32.mrb[0].mxu0
          %v788 = vpop.f32.mrb[0].mxu0
          %v789 = vadd.f32 0.0, %v788
          %v790 = vpop.f32.mrb[0].mxu0
          %791 = vmatprep.mubr.bf16.mxu0 0
          %792 = vmatmul.mubr.bf16.gmra.mrb[0].mxu0 %v682
          %v793 = vpop.f32.mrb[0].mxu0
          %v794 = vadd.f32 0.0, %v793
          %v795 = vpop.f32.mrb[0].mxu0
          %v796 = vpop.f32.mrb[0].mxu0
          %v797 = vadd.f32 0.0, %v796
          %v798 = vpop.f32.mrb[0].mxu0
          %799 = vdwg.mxu0
          %v800 = vpack.c.bf16 %v789, %v786
          %v801 = vpack.c.bf16 %v797, %v794
          %v802 = vpack.c.bf16 %v722, %v719
          %v803 = vpack.c.bf16 %v730, %v727
          %vm804 = vcmask 64512
          %v806 = vsel %vm804, %v802, 0
          %v809 = vsel %vm804, %v803, 0
          %v812 = vsel %vm804, %v800, 0
          %v815 = vsel %vm804, %v801, 0
          %817 = vmatprep.subr.bf16.mxu0 0
          %818 = vmatpush1.bf16.xpose.msra.mxu0 %v812
          %819 = vmatprep.subr.bf16.mxu0 0
          %820 = vmatpush1.bf16.xpose.msra.mxu0 %v815
          %821 = vmatprep.subr.bf16.mxu0 0
          %822 = vmatpush1.bf16.xpose.msra.mxu0 0
          %823 = vmatprep.subr.bf16.mxu0 0
          %824 = vmatpush1.bf16.xpose.msra.mxu0 0
          %825 = vmatprep.subr.bf16.mxu0 0
          %826 = vmatpush1.bf16.xpose.msra.mxu0 0
          %827 = vmatprep.subr.bf16.mxu0 0
          %828 = vmatpush1.bf16.xpose.msra.mxu0 0
          %829 = vmatprep.subr.bf16.mxu0 0
          %830 = vmatpush1.bf16.xpose.msra.mxu0 0
          %831 = vmatprep.subr.bf16.mxu0 0
          %832 = vmatpush1.bf16.xpose.msra.mxu0 0
          %833 = vmatprep.subr.bf16.mxu0 0
          %834 = vmatpush1.bf16.xpose.msra.mxu0 0
          %835 = vmatprep.subr.bf16.mxu0 0
          %836 = vmatpush1.bf16.xpose.msra.mxu0 0
          %837 = vmatprep.subr.bf16.mxu0 0
          %838 = vmatpush1.bf16.xpose.msra.mxu0 0
          %839 = vmatprep.subr.bf16.mxu0 0
          %840 = vmatpush1.bf16.xpose.msra.mxu0 0
          %841 = vmatprep.subr.bf16.mxu0 0
          %842 = vmatpush1.bf16.xpose.msra.mxu0 0
          %843 = vmatprep.subr.bf16.mxu0 0
          %844 = vmatpush1.bf16.xpose.msra.mxu0 0
          %845 = vmatprep.subr.bf16.mxu0 0
          %846 = vmatpush1.bf16.xpose.msra.mxu0 0
          %847 = vmatprep.subr.bf16.mxu0 0
          %848 = vmatpush1.bf16.xpose.msra.mxu0 0
          %849 = vmatprep.mubr.bf16.mxu0 0
          %850 = vmatmul.mubr.bf16.gmra.mrb[0].mxu0 %v806
          %v851 = vpop.f32.mrb[0].mxu0
          %v852 = vadd.f32 0.0, %v851
          %v853 = vpop.f32.mrb[0].mxu0
          %v854 = vpop.f32.mrb[0].mxu0
          %v855 = vadd.f32 0.0, %v854
          %v856 = vpop.f32.mrb[0].mxu0
          %857 = vmatprep.mubr.bf16.mxu0 0
          %858 = vmatmul.mubr.bf16.gmra.mrb[0].mxu0 %v809
          %v859 = vpop.f32.mrb[0].mxu0
          %v860 = vadd.f32 0.0, %v859
          %v861 = vpop.f32.mrb[0].mxu0
          %v862 = vpop.f32.mrb[0].mxu0
          %v863 = vadd.f32 0.0, %v862
          %v864 = vpop.f32.mrb[0].mxu0
          %865 = vdwg.mxu0
          %v866 = vsel %vm677, %v852, -inf
          %867 = vmax.xlane.f32.xlu0 %v866
          %v868 = vpop.xlane.xlu0 %867
          %v869 = vsel %vm677, %v855, -inf
          %870 = vmax.xlane.f32.xlu0 %v869
          %v871 = vpop.xlane.xlu0 %870
          %v872 = vsel %vm677, %v860, -inf
          %873 = vmax.xlane.f32.xlu0 %v872
          %v874 = vpop.xlane.xlu0 %873
          %v875 = vsel %vm677, %v863, -inf
          %876 = vmax.xlane.f32.xlu0 %v875
          %v877 = vpop.xlane.xlu0 %876
          %v878 = vsub.f32 %v852, %v868
          %v879 = vsub.f32 %v855, %v871
          %v880 = vsub.f32 %v860, %v874
          %v881 = vsub.f32 %v863, %v877
          %v882 = vmul.f32 %v878, 1.442695
          %v883 = vpow.pop %v882
          %v884 = vmul.f32 %v879, 1.442695
          %v885 = vpow.pop %v884
          %v886 = vmul.f32 %v880, 1.442695
          %v887 = vpow.pop %v886
          %v888 = vmul.f32 %v881, 1.442695
          %v889 = vpow.pop %v888
          %v890 = vsel %vm677, %v883, 0.0
          %891 = vadd.xlane.f32.xlu0 %v890
          %v892 = vpop.xlane.xlu0 %891
          %v893 = vsel %vm677, %v885, 0.0
          %894 = vadd.xlane.f32.xlu0 %v893
          %v895 = vpop.xlane.xlu0 %894
          %v896 = vsel %vm677, %v887, 0.0
          %897 = vadd.xlane.f32.xlu0 %v896
          %v898 = vpop.xlane.xlu0 %897
          %v899 = vsel %vm677, %v889, 0.0
          %900 = vadd.xlane.f32.xlu0 %v899
          %v901 = vpop.xlane.xlu0 %900
          %v902 = vrcp.pop %v892
          %v903 = vrcp.pop %v895
          %v904 = vrcp.pop %v898
          %v905 = vrcp.pop %v901
          %v906 = vmul.f32 %v883, %v902
          %v907 = vmul.f32 %v885, %v903
          %v908 = vmul.f32 %v887, %v904
          %v909 = vmul.f32 %v889, %v905
          %s910 = smul.u32 %s649, 32
          %s911 = scalar_lea.vmem %s637, %s910 [#allocation23]
          %912 = vst.msk [vmem:[%s911] sm:$0xff] %vm677, %v906
          %913 = vst.msk [vmem:[%s911 + $0x8] sm:$0xff] %vm677, %v907
          %914 = vst.msk [vmem:[%s911 + $0x10] sm:$0xff] %vm677, %v908
          %915 = vst.msk [vmem:[%s911 + $0x18] sm:$0xff] %vm677, %v909
          %v916 = vpack.c.bf16 %v907, %v906
          %v917 = vpack.c.bf16 %v909, %v908
          %920 = vrot.lane.b32.xlu0 %v800, 120
          %v921 = vpop.permute.xlu0 %920
          %922 = vrot.lane.b32.xlu0 %v801, 120
          %v923 = vpop.permute.xlu0 %922
          %v927 = vsel %vm677, %v916, 0
          %v930 = vsel %vm677, %v917, 0
          %932 = vmatprep.subr.bf16.mxu0 0
          %933 = vmatpush1.bf16.msra.mxu0 %v921
          %934 = vmatprep.subr.bf16.mxu0 0
          %935 = vmatpush1.bf16.msra.mxu0 %v923
          %936 = vmatprep.subr.bf16.mxu0 0
          %937 = vmatpush1.bf16.msra.mxu0 0
          %938 = vmatprep.subr.bf16.mxu0 0
          %939 = vmatpush1.bf16.msra.mxu0 0
          %940 = vmatprep.subr.bf16.mxu0 0
          %941 = vmatpush1.bf16.msra.mxu0 0
          %942 = vmatprep.subr.bf16.mxu0 0
          %943 = vmatpush1.bf16.msra.mxu0 0
          %944 = vmatprep.subr.bf16.mxu0 0
          %945 = vmatpush1.bf16.msra.mxu0 0
          %946 = vmatprep.subr.bf16.mxu0 0
          %947 = vmatpush1.bf16.msra.mxu0 0
          %948 = vmatprep.subr.bf16.mxu0 0
          %949 = vmatpush1.bf16.msra.mxu0 0
          %950 = vmatprep.subr.bf16.mxu0 0
          %951 = vmatpush1.bf16.msra.mxu0 0
          %952 = vmatprep.subr.bf16.mxu0 0
          %953 = vmatpush1.bf16.msra.mxu0 0
          %954 = vmatprep.subr.bf16.mxu0 0
          %955 = vmatpush1.bf16.msra.mxu0 0
          %956 = vmatprep.subr.bf16.mxu0 0
          %957 = vmatpush1.bf16.msra.mxu0 0
          %958 = vmatprep.subr.bf16.mxu0 0
          %959 = vmatpush1.bf16.msra.mxu0 0
          %960 = vmatprep.subr.bf16.mxu0 0
          %961 = vmatpush1.bf16.msra.mxu0 0
          %962 = vmatprep.subr.bf16.mxu0 0
          %963 = vmatpush1.bf16.msra.mxu0 0
          %964 = vmatprep.mubr.bf16.mxu0 0
          %965 = vmatmul.mubr.bf16.gmra.mrb[0].mxu0 %v927
          %v966 = vpop.f32.mrb[0].mxu0
          %v967 = vadd.f32 0.0, %v966
          %v968 = vpop.f32.mrb[0].mxu0
          %v969 = vpop.f32.mrb[0].mxu0
          %v970 = vadd.f32 0.0, %v969
          %v971 = vpop.f32.mrb[0].mxu0
          %972 = vmatprep.mubr.bf16.mxu0 0
          %973 = vmatmul.mubr.bf16.gmra.mrb[0].mxu0 %v930
          %v974 = vpop.f32.mrb[0].mxu0
          %v975 = vadd.f32 0.0, %v974
          %v976 = vpop.f32.mrb[0].mxu0
          %v977 = vpop.f32.mrb[0].mxu0
          %v978 = vadd.f32 0.0, %v977
          %v979 = vpop.f32.mrb[0].mxu0
          %980 = vdwg.mxu0
          %v981 = vpack.c.bf16 %v970, %v967
          %v982 = vpack.c.bf16 %v978, %v975
          %s983 = smul.addr %s649, 4
          %s984 = scalar_lea.vmem [#allocation8], %s983
          %v985 = vld [vmem:[%s984] sm:$0xf]
          %v987 = vsel %vm804, %v981, 0
          %v990 = vsel %vm804, %v982, 0
          %vm992 = vcmask 1043456
          %v994 = vsel %vm992, %v985, 0
          %996 = vmatprep.subr.bf16.mxu0 0
          %997 = vmatpush1.bf16.msra.mxu0 %v994
          %998 = vmatprep.subr.bf16.mxu0 0
          %999 = vmatpush1.bf16.msra.mxu0 0
          %1000 = vmatprep.subr.bf16.mxu0 0
          %1001 = vmatpush1.bf16.msra.mxu0 0
          %1002 = vmatprep.subr.bf16.mxu0 0
          %1003 = vmatpush1.bf16.msra.mxu0 0
          %1004 = vmatprep.subr.bf16.mxu0 0
          %1005 = vmatpush1.bf16.msra.mxu0 0
          %1006 = vmatprep.subr.bf16.mxu0 0
          %1007 = vmatpush1.bf16.msra.mxu0 0
          %1008 = vmatprep.subr.bf16.mxu0 0
          %1009 = vmatpush1.bf16.msra.mxu0 0
          %1010 = vmatprep.subr.bf16.mxu0 0
          %1011 = vmatpush1.bf16.msra.mxu0 0
          %1012 = vmatprep.subr.bf16.mxu0 0
          %1013 = vmatpush1.bf16.msra.mxu0 0
          %1014 = vmatprep.subr.bf16.mxu0 0
          %1015 = vmatpush1.bf16.msra.mxu0 0
          %1016 = vmatprep.subr.bf16.mxu0 0
          %1017 = vmatpush1.bf16.msra.mxu0 0
          %1018 = vmatprep.subr.bf16.mxu0 0
          %1019 = vmatpush1.bf16.msra.mxu0 0
          %1020 = vmatprep.subr.bf16.mxu0 0
          %1021 = vmatpush1.bf16.msra.mxu0 0
          %1022 = vmatprep.subr.bf16.mxu0 0
          %1023 = vmatpush1.bf16.msra.mxu0 0
          %1024 = vmatprep.subr.bf16.mxu0 0
          %1025 = vmatpush1.bf16.msra.mxu0 0
          %1026 = vmatprep.subr.bf16.mxu0 0
          %1027 = vmatpush1.bf16.msra.mxu0 0
          %1028 = vmatprep.mubr.bf16.mxu0 0
          %1029 = vmatmul.mubr.bf16.gmra.mrb[0].mxu0 %v987
          %v1030 = vpop.f32.mrb[0].mxu0
          %v1031 = vadd.f32 0.0, %v1030
          %v1032 = vpop.f32.mrb[0].mxu0
          %v1033 = vpop.f32.mrb[0].mxu0
          %v1034 = vadd.f32 0.0, %v1033
          %v1035 = vpop.f32.mrb[0].mxu0
          %1036 = vmatprep.mubr.bf16.mxu0 0
          %1037 = vmatmul.mubr.bf16.gmra.mrb[0].mxu0 %v990
          %v1038 = vpop.f32.mrb[0].mxu0
          %v1039 = vadd.f32 0.0, %v1038
          %v1040 = vpop.f32.mrb[0].mxu0
          %v1041 = vpop.f32.mrb[0].mxu0
          %v1042 = vadd.f32 0.0, %v1041
          %v1043 = vpop.f32.mrb[0].mxu0
          %1044 = vdwg.mxu0
          %v1045 = vadd.f32 %v654, %v1031
          %v1046 = vadd.f32 %v655, %v1034
          %v1047 = vadd.f32 %v656, %v1039
          %v1048 = vadd.f32 %v657, %v1042
        $region121: #{tpu_custom_call.1} parent=67 // loop_footer
          %s653 = sadd.s32 1, %s649
        $region122: #{tpu_custom_call.1} parent=67 // loop_footer_branch
          %648 = sbr.rel target = $region118
        $region123: #{tpu_custom_call.1} parent=67 // loop_exit
          _
        %v1049 = vadd.f32 %v654, %v642
        %v1050 = vadd.f32 %v655, %v643
        %v1051 = vadd.f32 %v656, %v644
        %v1052 = vadd.f32 %v657, %v645
        %vm1053 = vcmask 261120
        %v1054 = vsel %vm1053, %v1049, 0.0
        %1055 = vadd.xlane.f32.xlu0 %v1054
        %v1056 = vpop.xlane.xlu0 %1055
        %v1057 = vsel %vm1053, %v1050, 0.0
        %1058 = vadd.xlane.f32.xlu0 %v1057
        %v1059 = vpop.xlane.xlu0 %1058
        %v1060 = vsel %vm1053, %v1051, 0.0
        %1061 = vadd.xlane.f32.xlu0 %v1060
        %v1062 = vpop.xlane.xlu0 %1061
        %v1063 = vsel %vm1053, %v1052, 0.0
        %1064 = vadd.xlane.f32.xlu0 %v1063
        %v1065 = vpop.xlane.xlu0 %1064
        %v1066 = vrcp.pop 32.0
        %v1067 = vmul.f32 %v1056, %v1066
        %v1068 = vmul.f32 %v1059, %v1066
        %v1069 = vmul.f32 %v1062, %v1066
        %v1070 = vmul.f32 %v1065, %v1066
        %v1071 = vsub.f32 %v1049, %v1067
        %v1072 = vsub.f32 %v1050, %v1068
        %v1073 = vsub.f32 %v1051, %v1069
        %v1074 = vsub.f32 %v1052, %v1070
        %v1075 = vmul.f32 %v1071, %v1071
        %v1076 = vmul.f32 %v1072, %v1072
        %v1077 = vmul.f32 %v1073, %v1073
        %v1078 = vmul.f32 %v1074, %v1074
        %v1079 = vsel %vm1053, %v1075, 0.0
        %1080 = vadd.xlane.f32.xlu0 %v1079
        %v1081 = vpop.xlane.xlu0 %1080
        %v1082 = vsel %vm1053, %v1076, 0.0
        %1083 = vadd.xlane.f32.xlu0 %v1082
        %v1084 = vpop.xlane.xlu0 %1083
        %v1085 = vsel %vm1053, %v1077, 0.0
        %1086 = vadd.xlane.f32.xlu0 %v1085
        %v1087 = vpop.xlane.xlu0 %1086
        %v1088 = vsel %vm1053, %v1078, 0.0
        %1089 = vadd.xlane.f32.xlu0 %v1088
        %v1090 = vpop.xlane.xlu0 %1089
        %v1091 = vmul.f32 %v1081, %v1066
        %v1092 = vmul.f32 %v1084, %v1066
        %v1093 = vmul.f32 %v1087, %v1066
        %v1094 = vmul.f32 %v1090, %v1066
        %v1095 = vadd.f32 %v1091, 1e-06
        %v1096 = vadd.f32 %v1092, 1e-06
        %v1097 = vadd.f32 %v1093, 1e-06
        %v1098 = vadd.f32 %v1094, 1e-06
        %v1099 = vrsqrt.pop %v1095
        %v1100 = vrsqrt.pop %v1096
        %v1101 = vrsqrt.pop %v1097
        %v1102 = vrsqrt.pop %v1098
        %v1103 = vmul.f32 %v1071, %v1099
        %v1104 = vmul.f32 %v1072, %v1100
        %v1105 = vmul.f32 %v1073, %v1101
        %v1106 = vmul.f32 %v1074, %v1102
        %v1107 = vld [vmem:[#allocation10] sm:$0x1]
        %v1109 = vlaneseq
        %v1110 = vshrl.u32 %v1109, 7
        %v1111 = vsub.s32 0, %v1110
        %v1112 = vrot.slane %v1107, %v1111
        %v1114 = vmul.f32 %v1103, %v1112
        %v1115 = vmul.f32 %v1104, %v1112
        %v1116 = vmul.f32 %v1105, %v1112
        %v1117 = vmul.f32 %v1106, %v1112
        %v1118 = vld [vmem:[#allocation11] sm:$0x1]
        %v1120 = vlaneseq
        %v1121 = vshrl.u32 %v1120, 7
        %v1122 = vsub.s32 0, %v1121
        %v1123 = vrot.slane %v1118, %v1122
        %v1125 = vadd.f32 %v1114, %v1123
        %v1126 = vadd.f32 %v1115, %v1123
        %v1127 = vadd.f32 %v1116, %v1123
        %v1128 = vadd.f32 %v1117, %v1123
        %v1129 = vpack.c.bf16 %v1126, %v1125
        %v1130 = vpack.c.bf16 %v1128, %v1127
        %v1131 = vld [vmem:[#allocation13] sm:$0xf]
        %v1132 = vld [vmem:[#allocation13 + $0x4] sm:$0xf]
        %v1133 = vld [vmem:[#allocation13 + $0x8] sm:$0xf]
        %v1134 = vld [vmem:[#allocation13 + $0xc] sm:$0xf]
        %v1135 = vld [vmem:[#allocation14] sm:$0x1]
        %v1137 = vlaneseq
        %v1138 = vshrl.u32 %v1137, 7
        %v1139 = vsub.s32 0, %v1138
        %v1140 = vrot.slane %v1135, %v1139
        %v1146 = vunpack.c.l.b16 %v1131
        %v1147 = vunpack.c.l.b16 %v1132
        %v1148 = vunpack.c.l.b16 %v1133
        %v1149 = vunpack.c.l.b16 %v1134
        %v1150 = vpack.c.b16 %v1147, %v1146
        %v1151 = vpack.c.b16 %v1149, %v1148
        %v1155 = vsel %vm1053, %v1129, 0
        %v1158 = vsel %vm1053, %v1130, 0
        %1160 = vmatprep.subr.bf16.mxu0 0
        %1161 = vmatpush1.bf16.msra.mxu0 %v1150
        %1162 = vmatprep.subr.bf16.mxu0 0
        %1163 = vmatpush1.bf16.msra.mxu0 %v1151
        %1164 = vmatprep.subr.bf16.mxu0 0
        %1165 = vmatpush1.bf16.msra.mxu0 0
        %1166 = vmatprep.subr.bf16.mxu0 0
        %1167 = vmatpush1.bf16.msra.mxu0 0
        %1168 = vmatprep.subr.bf16.mxu0 0
        %1169 = vmatpush1.bf16.msra.mxu0 0
        %1170 = vmatprep.subr.bf16.mxu0 0
        %1171 = vmatpush1.bf16.msra.mxu0 0
        %1172 = vmatprep.subr.bf16.mxu0 0
        %1173 = vmatpush1.bf16.msra.mxu0 0
        %1174 = vmatprep.subr.bf16.mxu0 0
        %1175 = vmatpush1.bf16.msra.mxu0 0
        %1176 = vmatprep.subr.bf16.mxu0 0
        %1177 = vmatpush1.bf16.msra.mxu0 0
        %1178 = vmatprep.subr.bf16.mxu0 0
        %1179 = vmatpush1.bf16.msra.mxu0 0
        %1180 = vmatprep.subr.bf16.mxu0 0
        %1181 = vmatpush1.bf16.msra.mxu0 0
        %1182 = vmatprep.subr.bf16.mxu0 0
        %1183 = vmatpush1.bf16.msra.mxu0 0
        %1184 = vmatprep.subr.bf16.mxu0 0
        %1185 = vmatpush1.bf16.msra.mxu0 0
        %1186 = vmatprep.subr.bf16.mxu0 0
        %1187 = vmatpush1.bf16.msra.mxu0 0
        %1188 = vmatprep.subr.bf16.mxu0 0
        %1189 = vmatpush1.bf16.msra.mxu0 0
        %1190 = vmatprep.subr.bf16.mxu0 0
        %1191 = vmatpush1.bf16.msra.mxu0 0
        %1192 = vmatprep.mubr.bf16.mxu0 0
        %1193 = vmatmul.mubr.bf16.gmra.mrb[0].mxu0 %v1155
        %v1194 = vpop.f32.mrb[0].mxu0
        %v1195 = vadd.f32 %v1140, %v1194
        %v1196 = vpop.f32.mrb[0].mxu0
        %v1197 = vpop.f32.mrb[0].mxu0
        %v1198 = vadd.f32 %v1140, %v1197
        %v1199 = vpop.f32.mrb[0].mxu0
        %1200 = vmatprep.mubr.bf16.mxu0 0
        %1201 = vmatmul.mubr.bf16.gmra.mrb[0].mxu0 %v1158
        %v1202 = vpop.f32.mrb[0].mxu0
        %v1203 = vadd.f32 %v1140, %v1202
        %v1204 = vpop.f32.mrb[0].mxu0
        %v1205 = vpop.f32.mrb[0].mxu0
        %v1206 = vadd.f32 %v1140, %v1205
        %v1207 = vpop.f32.mrb[0].mxu0
        %1208 = vdwg.mxu0
        %v1209 = vmax.f32 %v1195, 0.0
        %v1210 = vmax.f32 %v1198, 0.0
        %v1211 = vmax.f32 %v1203, 0.0
        %v1212 = vmax.f32 %v1206, 0.0
        %v1213 = vpack.c.bf16 %v1210, %v1209
        %v1214 = vpack.c.bf16 %v1212, %v1211
        %v1215 = vld [vmem:[#allocation16] sm:$0xf]
        %v1216 = vld [vmem:[#allocation16 + $0x4] sm:$0xf]
        %v1217 = vld [vmem:[#allocation16 + $0x8] sm:$0xf]
        %v1218 = vld [vmem:[#allocation16 + $0xc] sm:$0xf]
        %v1219 = vld [vmem:[#allocation16 + $0x10] sm:$0xf]
        %v1220 = vld [vmem:[#allocation16 + $0x14] sm:$0xf]
        %v1221 = vld [vmem:[#allocation16 + $0x18] sm:$0xf]
        %v1222 = vld [vmem:[#allocation16 + $0x1c] sm:$0xf]
        %v1223 = vld [vmem:[#allocation17] sm:$0x1]
        %v1225 = vlaneseq
        %v1226 = vshrl.u32 %v1225, 7
        %v1227 = vsub.s32 0, %v1226
        %v1228 = vrot.slane %v1223, %v1227
        %v1238 = vunpack.c.l.b16 %v1215
        %v1239 = vunpack.c.l.b16 %v1216
        %v1240 = vunpack.c.l.b16 %v1217
        %v1241 = vunpack.c.l.b16 %v1218
        %v1242 = vunpack.c.l.b16 %v1219
        %v1243 = vunpack.c.l.b16 %v1220
        %v1244 = vunpack.c.l.b16 %v1221
        %v1245 = vunpack.c.l.b16 %v1222
        %v1246 = vpack.c.b16 %v1239, %v1238
        %v1247 = vpack.c.b16 %v1241, %v1240
        %v1248 = vpack.c.b16 %v1243, %v1242
        %v1249 = vpack.c.b16 %v1245, %v1244
        %vm1254 = vcmask 523264
        %v1256 = vsel %vm1254, %v1213, 0
        %v1259 = vsel %vm1254, %v1214, 0
        %1261 = vmatprep.subr.bf16.mxu0 0
        %1262 = vmatpush1.bf16.msra.mxu0 %v1246
        %1263 = vmatprep.subr.bf16.mxu0 0
        %1264 = vmatpush1.bf16.msra.mxu0 %v1247
        %1265 = vmatprep.subr.bf16.mxu0 0
        %1266 = vmatpush1.bf16.msra.mxu0 %v1248
        %1267 = vmatprep.subr.bf16.mxu0 0
        %1268 = vmatpush1.bf16.msra.mxu0 %v1249
        %1269 = vmatprep.subr.bf16.mxu0 0
        %1270 = vmatpush1.bf16.msra.mxu0 0
        %1271 = vmatprep.subr.bf16.mxu0 0
        %1272 = vmatpush1.bf16.msra.mxu0 0
        %1273 = vmatprep.subr.bf16.mxu0 0
        %1274 = vmatpush1.bf16.msra.mxu0 0
        %1275 = vmatprep.subr.bf16.mxu0 0
        %1276 = vmatpush1.bf16.msra.mxu0 0
        %1277 = vmatprep.subr.bf16.mxu0 0
        %1278 = vmatpush1.bf16.msra.mxu0 0
        %1279 = vmatprep.subr.bf16.mxu0 0
        %1280 = vmatpush1.bf16.msra.mxu0 0
        %1281 = vmatprep.subr.bf16.mxu0 0
        %1282 = vmatpush1.bf16.msra.mxu0 0
        %1283 = vmatprep.subr.bf16.mxu0 0
        %1284 = vmatpush1.bf16.msra.mxu0 0
        %1285 = vmatprep.subr.bf16.mxu0 0
        %1286 = vmatpush1.bf16.msra.mxu0 0
        %1287 = vmatprep.subr.bf16.mxu0 0
        %1288 = vmatpush1.bf16.msra.mxu0 0
        %1289 = vmatprep.subr.bf16.mxu0 0
        %1290 = vmatpush1.bf16.msra.mxu0 0
        %1291 = vmatprep.subr.bf16.mxu0 0
        %1292 = vmatpush1.bf16.msra.mxu0 0
        %1293 = vmatprep.mubr.bf16.mxu0 0
        %1294 = vmatmul.mubr.bf16.gmra.mrb[0].mxu0 %v1256
        %v1295 = vpop.f32.mrb[0].mxu0
        %v1296 = vadd.f32 %v1228, %v1295
        %v1297 = vpop.f32.mrb[0].mxu0
        %v1298 = vpop.f32.mrb[0].mxu0
        %v1299 = vadd.f32 %v1228, %v1298
        %v1300 = vpop.f32.mrb[0].mxu0
        %1301 = vmatprep.mubr.bf16.mxu0 0
        %1302 = vmatmul.mubr.bf16.gmra.mrb[0].mxu0 %v1259
        %v1303 = vpop.f32.mrb[0].mxu0
        %v1304 = vadd.f32 %v1228, %v1303
        %v1305 = vpop.f32.mrb[0].mxu0
        %v1306 = vpop.f32.mrb[0].mxu0
        %v1307 = vadd.f32 %v1228, %v1306
        %v1308 = vpop.f32.mrb[0].mxu0
        %1309 = vdwg.mxu0
        %v1310 = vadd.f32 %v1296, %v1125
        %v1311 = vadd.f32 %v1299, %v1126
        %v1312 = vadd.f32 %v1304, %v1127
        %v1313 = vadd.f32 %v1307, %v1128
        %v1314 = vsel %vm1053, %v1310, 0.0
        %1315 = vadd.xlane.f32.xlu0 %v1314
        %v1316 = vpop.xlane.xlu0 %1315
        %v1317 = vsel %vm1053, %v1311, 0.0
        %1318 = vadd.xlane.f32.xlu0 %v1317
        %v1319 = vpop.xlane.xlu0 %1318
        %v1320 = vsel %vm1053, %v1312, 0.0
        %1321 = vadd.xlane.f32.xlu0 %v1320
        %v1322 = vpop.xlane.xlu0 %1321
        %v1323 = vsel %vm1053, %v1313, 0.0
        %1324 = vadd.xlane.f32.xlu0 %v1323
        %v1325 = vpop.xlane.xlu0 %1324
        %v1326 = vmul.f32 %v1316, %v1066
        %v1327 = vmul.f32 %v1319, %v1066
        %v1328 = vmul.f32 %v1322, %v1066
        %v1329 = vmul.f32 %v1325, %v1066
        %v1330 = vsub.f32 %v1310, %v1326
        %v1331 = vsub.f32 %v1311, %v1327
        %v1332 = vsub.f32 %v1312, %v1328
        %v1333 = vsub.f32 %v1313, %v1329
        %v1334 = vmul.f32 %v1330, %v1330
        %v1335 = vmul.f32 %v1331, %v1331
        %v1336 = vmul.f32 %v1332, %v1332
        %v1337 = vmul.f32 %v1333, %v1333
        %v1338 = vsel %vm1053, %v1334, 0.0
        %1339 = vadd.xlane.f32.xlu0 %v1338
        %v1340 = vpop.xlane.xlu0 %1339
        %v1341 = vsel %vm1053, %v1335, 0.0
        %1342 = vadd.xlane.f32.xlu0 %v1341
        %v1343 = vpop.xlane.xlu0 %1342
        %v1344 = vsel %vm1053, %v1336, 0.0
        %1345 = vadd.xlane.f32.xlu0 %v1344
        %v1346 = vpop.xlane.xlu0 %1345
        %v1347 = vsel %vm1053, %v1337, 0.0
        %1348 = vadd.xlane.f32.xlu0 %v1347
        %v1349 = vpop.xlane.xlu0 %1348
        %v1350 = vmul.f32 %v1340, %v1066
        %v1351 = vmul.f32 %v1343, %v1066
        %v1352 = vmul.f32 %v1346, %v1066
        %v1353 = vmul.f32 %v1349, %v1066
        %v1354 = vadd.f32 %v1350, 1e-06
        %v1355 = vadd.f32 %v1351, 1e-06
        %v1356 = vadd.f32 %v1352, 1e-06
        %v1357 = vadd.f32 %v1353, 1e-06
        %v1358 = vrsqrt.pop %v1354
        %v1359 = vrsqrt.pop %v1355
        %v1360 = vrsqrt.pop %v1356
        %v1361 = vrsqrt.pop %v1357
        %v1362 = vmul.f32 %v1330, %v1358
        %v1363 = vmul.f32 %v1331, %v1359
        %v1364 = vmul.f32 %v1332, %v1360
        %v1365 = vmul.f32 %v1333, %v1361
        %v1366 = vld [vmem:[#allocation19] sm:$0x1]
        %v1368 = vlaneseq
        %v1369 = vshrl.u32 %v1368, 7
        %v1370 = vsub.s32 0, %v1369
        %v1371 = vrot.slane %v1366, %v1370
        %v1373 = vmul.f32 %v1362, %v1371
        %v1374 = vmul.f32 %v1363, %v1371
        %v1375 = vmul.f32 %v1364, %v1371
        %v1376 = vmul.f32 %v1365, %v1371
        %v1377 = vld [vmem:[#allocation20] sm:$0x1]
        %v1379 = vlaneseq
        %v1380 = vshrl.u32 %v1379, 7
        %v1381 = vsub.s32 0, %v1380
        %v1382 = vrot.slane %v1377, %v1381
        %v1384 = vadd.f32 %v1373, %v1382
        %v1385 = vadd.f32 %v1374, %v1382
        %v1386 = vadd.f32 %v1375, %v1382
        %v1387 = vadd.f32 %v1376, %v1382
        %1388 = vst.msk [vmem:[%s630] sm:$0xff] %vm1053, %v1384
        %1389 = vst.msk [vmem:[%s630 + $0x8] sm:$0xff] %vm1053, %v1385
        %1390 = vst.msk [vmem:[%s630 + $0x10] sm:$0xff] %vm1053, %v1386
        %1391 = vst.msk [vmem:[%s630 + $0x18] sm:$0xff] %vm1053, %v1387
        %s1392 = sand.u32 %s321, 1
        %s1393 = scalar_lea.sflag [#allocation4], %s1392
        %s1394 = sand.u32 %s321, 1
        %s1395 = smul.addr %s1394, 32
        %s1396 = scalar_lea.vmem [#allocation22], %s1395
        %s1397 = sand.u32 %s349, 1
        %s1398 = scalar_lea.sflag [#allocation24], %s1397
        %s1399 = sand.u32 %s349, 1
        %s1400 = smul.addr %s1399, 128
        %s1401 = scalar_lea.vmem [#allocation23], %s1400
        // Predicated region
        $region124: #{tpu_custom_call.1} parent=67 // pred_check
          %p1402 = pneg %p331
        $region125: #{tpu_custom_call.1} parent=67 // pred_check_branch
          %1404 = sbr.rel (%p1402) target = $region127
        $region126: #{tpu_custom_call.1} parent=67 // pred_region
          %s1405 = smul.u32 4, %s45
          %s1407 = ssub.s32 512, 512
          %1408 = vsyncadd %s1393, %s1407
          %s1409 = smul.addr %s44, 4
          %s1410 = sadd.s32 %s1405, %s1409
          %s1411 = smul.addr %s1410, 128
          %s1412 = scalar_lea.hbm %s12, %s1411
          %s1413 = sshll.u32 %s1396, 4
          %s1414 = int_to_ptr.vmem [resolvable:$true] %s1413
          %1419 = dma.vmem_to_hbm [thread:$0]  %s1414, 512, %s1412, %s1393, 128, 128, 8
        $region127: #{tpu_custom_call.1} parent=67 // pred_fallthru
          _
        // Predicated region
        $region128: #{tpu_custom_call.1} parent=67 // pred_check
          %p1420 = pneg %p359
        $region129: #{tpu_custom_call.1} parent=67 // pred_check_branch
          %1422 = sbr.rel (%p1420) target = $region131
        $region130: #{tpu_custom_call.1} parent=67 // pred_region
          %s1423 = smul.u32 4, %s45
          %s1425 = ssub.s32 2048, 2048
          %1426 = vsyncadd %s1398, %s1425
          %s1427 = smul.addr %s44, 16
          %s1428 = sadd.s32 %s1423, %s1427
          %s1429 = smul.addr %s1428, 128
          %s1430 = scalar_lea.hbm %s13, %s1429
          %s1431 = sshll.u32 %s1401, 4
          %s1432 = int_to_ptr.vmem [resolvable:$true] %s1431
          %1437 = dma.vmem_to_hbm [thread:$0]  %s1432, 2048, %s1430, %s1398, 128, 128, 8
        $region131: #{tpu_custom_call.1} parent=67 // pred_fallthru
          _
      $region68: #{tpu_custom_call.1} parent=5 // pred_fallthru
        _
      %p1438 = scmp.le.s32.totalorder 2, %s35
      // Predicated region
      $region132: #{tpu_custom_call.1} parent=5 // pred_check
        %p1439 = pneg %p1438
      $region133: #{tpu_custom_call.1} parent=5 // pred_check_branch
        %1441 = sbr.rel (%p1439) target = $region135
      $region134: #{tpu_custom_call.1} parent=5 // pred_region
        %s1442 = ssub.s32 %s35, 2
        // Predicated region
        $region136: #{tpu_custom_call.1} parent=134 // pred_check
          %p1443 = pneg %p337
        $region137: #{tpu_custom_call.1} parent=134 // pred_check_branch
          %1445 = sbr.rel (%p1443) target = $region139
        $region138: #{tpu_custom_call.1} parent=134 // pred_region
          %s1446 = sand.u32 %s322, 1
          %s1447 = scalar_lea.sflag [#allocation4], %s1446
          %s1448 = sand.u32 %s322, 1
          %s1449 = smul.addr %s1448, 32
          %s1450 = scalar_lea.vmem [#allocation22], %s1449
          %1451 = dma.done %s1447, 512
        $region139: #{tpu_custom_call.1} parent=134 // pred_fallthru
          _
        // Predicated region
        $region140: #{tpu_custom_call.1} parent=134 // pred_check
          %p1452 = pneg %p365
        $region141: #{tpu_custom_call.1} parent=134 // pred_check_branch
          %1454 = sbr.rel (%p1452) target = $region143
        $region142: #{tpu_custom_call.1} parent=134 // pred_region
          %s1455 = sand.u32 %s350, 1
          %s1456 = scalar_lea.sflag [#allocation24], %s1455
          %s1457 = sand.u32 %s350, 1
          %s1458 = smul.addr %s1457, 128
          %s1459 = scalar_lea.vmem [#allocation23], %s1458
          %1460 = dma.done %s1456, 2048
        $region143: #{tpu_custom_call.1} parent=134 // pred_fallthru
          _
      $region135: #{tpu_custom_call.1} parent=5 // pred_fallthru
        _
    $region6: #{tpu_custom_call.1} parent=1 // loop_footer
      %s39 = sadd.s32 1, %s35
    $region7: #{tpu_custom_call.1} parent=1 // loop_footer_branch
      %34 = sbr.rel target = $region3
    $region8: #{tpu_custom_call.1} parent=1 // loop_exit
      _
    %1461 = vsyncpa [#allocation3], 1
    %s1462 = scalar_lea.sflag [#allocation3], 1
    %1463 = vsyncpa %s1462, 1
    %1464 = vsyncpa [#allocation6], 1
    %1465 = vsyncpa [#allocation9], 1
    %1466 = vsyncpa [#allocation12], 1
    %1467 = vsyncpa [#allocation15], 1
    %1468 = vsyncpa [#allocation18], 1
    %1469 = vsyncpa [#allocation21], 1
    %1470 = vsyncpa [#allocation4], 1
    %s1471 = scalar_lea.sflag [#allocation4], 1
    %1472 = vsyncpa %s1471, 1
    %1473 = vsyncpa [#allocation24], 1
    %s1474 = scalar_lea.sflag [#allocation24], 1
    %1475 = vsyncpa %s1474, 1

</llo_original>
